<compile_context>
chip_gen: v6e
topology: v6e:2x2x1
jax: 0.10.0
libtpu: 0.0.40
codegen_flags: <defaults>
</compile_context>

<pallas_src>
import jax
import jax.numpy as jnp
import numpy as np
from jax.experimental import pallas as pl
from jax.experimental.pallas import tpu as pltpu

# ---- model hyper-parameters (small, consistent with the module) --------------
D_MODEL = 32
NHEAD = 4
DIM_FF = 64
HEAD_DIM = D_MODEL // NHEAD
EPS = 1e-5           # nn.LayerNorm default eps

# 128-lane-aligned column offsets inside the packed weight slab.
_QKV_COL = 0          # (E, 3E) fused q/k/v projection (q-scale folded in)
_OUT_COL = 128        # (E, E)  attention output projection
_FF1_COL = 256        # (E, F)  feed-forward linear1
_SLAB_COLS = 384


def _layer_norm(x, gamma, beta):
    mu = jnp.mean(x, axis=-1, keepdims=True)
    var = jnp.mean((x - mu) ** 2, axis=-1, keepdims=True)
    return (x - mu) * jax.lax.rsqrt(var + EPS) * gamma + beta


# ------------------------------- Pallas kernel --------------------------------
def encoder_layer_kernel(src_ref, tar_ref, w_slab_ref, w2_ref, vec_ref, o_ref):
    E, H, hd, F = D_MODEL, NHEAD, HEAD_DIM, DIM_FF
    B, L, _ = src_ref.shape
    S = tar_ref.shape[1]
    BL, BS = B * L, B * S

    # ---- unpack parameter slabs (all slices row-indexed / 128-lane aligned) ---
    w = w_slab_ref[...]                               # (E, 384)
    w_qkv = w[:, _QKV_COL:_QKV_COL + 3 * E]           # (E, 3E), q-scale pre-folded
    w_out = w[:, _OUT_COL:_OUT_COL + E]               # (E, E)
    w_ff1 = w[:, _FF1_COL:_FF1_COL + F]               # (E, F)
    w_ff2 = w2_ref[...]                               # (F, E)

    vec = vec_ref[...]                                # (8, 128): one param per row
    b_qkv = vec[0:1, 0:3 * E]
    b_out = vec[1:2, 0:E]
    b_ff1 = vec[2:3, 0:F]
    b_ff2 = vec[3:4, 0:E]
    g1, be1 = vec[4:5, 0:E], vec[5:6, 0:E]
    g2, be2 = vec[6:7, 0:E], vec[7:8, 0:E]

    # ---- fused QKV projection: one MXU pass over stacked [src; tar] rows ------
    src2d = src_ref[...].reshape(BL, E)
    tar2d = tar_ref[...].reshape(BS, E)
    rows = jnp.concatenate([src2d, tar2d], axis=0)              # (BL+BS, E)
    proj = jnp.dot(rows, w_qkv, preferred_element_type=jnp.float32) + b_qkv

    q = proj[:BL, 0:E].reshape(B, L, E)        # already scaled by 1/sqrt(hd)
    k = proj[BL:, E:2 * E].reshape(B, S, E)
    v = proj[BL:, 2 * E:3 * E].reshape(B, S, E)

    # ---- multi-head attention --------------------------------------------------
    # Per-head QK^T scores stacked along a leading axis so the serial softmax
    # chain (max -> exp -> sum -> divide) runs ONCE over all heads.
    s_list = [
        jnp.einsum('bld,bsd->bls',
                   q[:, :, h * hd:(h + 1) * hd],
                   k[:, :, h * hd:(h + 1) * hd],
                   preferred_element_type=jnp.float32)
        for h in range(H)
    ]
    s_all = jnp.concatenate(s_list, axis=0)                     # (H*B, L, S)
    s_all = s_all - jnp.max(s_all, axis=-1, keepdims=True)
    p_all = jnp.exp(s_all)
    p_all = p_all / jnp.sum(p_all, axis=-1, keepdims=True)      # exact softmax

    # P @ V per head with the output projection folded in, so the head outputs
    # never need an 8-lane-granularity concatenation:
    #   attn @ Wout^T = sum_h o_h @ Wout^T[h*hd:(h+1)*hd, :]
    acc = None
    for h in range(H):
        p_h = p_all[h * B:(h + 1) * B]                          # (B, L, S)
        o_h = jnp.einsum('bls,bsd->bld', p_h,
                         v[:, :, h * hd:(h + 1) * hd],
                         preferred_element_type=jnp.float32)    # (B, L, hd)
        contrib = jnp.dot(o_h.reshape(BL, hd),
                          w_out[h * hd:(h + 1) * hd, :],
                          preferred_element_type=jnp.float32)   # (BL, E)
        acc = contrib if acc is None else acc + contrib
    attn = acc + b_out                                          # (BL, E)

    # dropout1 is identity in eval -> norm1 directly on the attention output
    x = _layer_norm(attn, g1, be1)

    # feed-forward: linear2(relu(linear1(x)))  (dropout is identity)
    h1 = jnp.dot(x, w_ff1, preferred_element_type=jnp.float32) + b_ff1
    h1 = jnp.maximum(h1, 0.0)
    ff = jnp.dot(h1, w_ff2, preferred_element_type=jnp.float32) + b_ff2

    y = _layer_norm(x + ff, g2, be2)                            # (BL, E)
    o_ref[...] = y.astype(o_ref.dtype)


# ------------------------------- JAX wrapper -----------------------------------
def _tensorcores_per_device():
    """TensorCores per device: prefer pltpu.get_tpu_info(), fall back gracefully."""
    try:
        info = pltpu.get_tpu_info()
        for attr in ("tensorcores_per_chip", "num_cores", "cores_per_chip", "core_count"):
            val = getattr(info, attr, None)
            if val is not None:
                val = int(val)
                if val > 0:
                    return val
    except Exception:
        pass
    try:
        kind = jax.devices()[0].device_kind.lower()
        return 2 if "v7" in kind else 1
    except Exception:
        return 1


def _choose_grid(N, L):
    """Split the batch across TensorCores only when each core gets enough rows."""
    n_tc = _tensorcores_per_device()
    if n_tc > 1 and N % n_tc == 0:
        B = N // n_tc
        # Work-size gate: splitting a tiny batch only adds per-step overhead and
        # halves already-tiny matmul M dims.  Also keep per-core blocks
        # sublane-aligned so the (8,128) block constraints hold.
        if B % 8 == 0 and B * L >= 256:
            return n_tc
    return 1


def _pack_params(params):
    """Pre-transpose weights, fold the q scale, pack into lane/row-aligned slabs."""
    E, F = D_MODEL, DIM_FF
    scale = 1.0 / (HEAD_DIM ** 0.5)

    def pad_cols(w, width):
        return jnp.pad(w, ((0, 0), (0, width - w.shape[1])))

    in_w_t = params['in_w'].T                                   # (E, 3E)
    in_w_t = jnp.concatenate([in_w_t[:, :E] * scale, in_w_t[:, E:]], axis=1)
    w_slab = jnp.concatenate([
        pad_cols(in_w_t, 128),                 # cols   0: 96  (w_qkv)
        pad_cols(params['out_w'].T, 128),      # cols 128:160  (w_out)
        pad_cols(params['lin1_w'].T, 128),     # cols 256:320  (w_ff1)
    ], axis=1)                                 # (E, 384)
    w2 = params['lin2_w'].T                    # (F, E)

    in_b = params['in_b'].reshape(-1)
    in_b = jnp.concatenate([in_b[:E] * scale, in_b[E:]])

    def row(vctr):
        vctr = vctr.reshape(-1)
        return jnp.pad(vctr, (0, 128 - vctr.shape[0]))

    vec = jnp.stack([
        row(in_b),                 # row 0: b_qkv (96)
        row(params['out_b']),      # row 1: b_out
        row(params['lin1_b']),     # row 2: b_ff1
        row(params['lin2_b']),     # row 3: b_ff2
        row(params['g1']),         # row 4: norm1 gamma
        row(params['b1']),         # row 5: norm1 beta
        row(params['g2']),         # row 6: norm2 gamma
        row(params['b2']),         # row 7: norm2 beta
    ], axis=0)                     # (8, 128)

    return (w_slab.astype(jnp.float32), w2.astype(jnp.float32),
            vec.astype(jnp.float32))


def va_cross_encoder_layer(src, tar, params):
    """src: (L, N, E), tar: (S, N, E) in the PyTorch MultiheadAttention layout."""
    L, N, E = src.shape
    S = tar.shape[0]
    src_b = jnp.transpose(src, (1, 0, 2))   # (N, L, E)
    tar_b = jnp.transpose(tar, (1, 0, 2))   # (N, S, E)

    w_slab, w2, vec = _pack_params(params)

    grid_n = _choose_grid(N, L)
    B = N // grid_n

    # VMEM note: live set here is < ~100 KB, far below the scoped default on every
    # generation (incl. v7x's 64 MiB physical); set
    # pltpu.CompilerParams(vmem_limit_bytes=...) only if L/S/N scale up.
    out2d = pl.pallas_call(
        encoder_layer_kernel,
        out_shape=jax.ShapeDtypeStruct((N * L, E), src.dtype),
        grid=(grid_n,),
        in_specs=[
            pl.BlockSpec((B, L, E), lambda b: (b, 0, 0)),   # src rows for this step
            pl.BlockSpec((B, S, E), lambda b: (b, 0, 0)),   # tar rows for this step
            pl.BlockSpec(w_slab.shape, lambda b: (0, 0)),   # packed weight slab
            pl.BlockSpec(w2.shape, lambda b: (0, 0)),       # linear2 weight (F, E)
            pl.BlockSpec(vec.shape, lambda b: (0, 0)),      # biases / LN params
        ],
        out_specs=pl.BlockSpec((B * L, E), lambda b: (b, 0)),
        compiler_params=pltpu.CompilerParams(dimension_semantics=("parallel",)),
    )(src_b, tar_b, w_slab, w2, vec)

    # (N*L, E) and (N, L, E) share the same HBM byte layout -> free reshape here.
    return jnp.transpose(out2d.reshape(N, L, E), (1, 0, 2))   # (L, N, E)


# --------------------------- pure-JAX reference ---------------------------------
def ref_forward(src, tar, p):
    E = D_MODEL
    wq, wk, wv = p['in_w'][:E], p['in_w'][E:2 * E], p['in_w'][2 * E:]
    bq, bk, bv = p['in_b'][0, :E], p['in_b'][0, E:2 * E], p['in_b'][0, 2 * E:]
    q = jnp.einsum('lne,fe->lnf', src, wq) + bq
    k = jnp.einsum('sne,fe->snf', tar, wk) + bk
    v = jnp.einsum('sne,fe->snf', tar, wv) + bv
    L, N, _ = src.shape
    S = tar.shape[0]
    qh = q.reshape(L, N, NHEAD, HEAD_DIM) / (HEAD_DIM ** 0.5)
    kh = k.reshape(S, N, NHEAD, HEAD_DIM)
    vh = v.reshape(S, N, NHEAD, HEAD_DIM)
    scores = jnp.einsum('lnhd,snhd->nhls', qh, kh)
    probs = jax.nn.softmax(scores, axis=-1)
    o = jnp.einsum('nhls,snhd->lnhd', probs, vh).reshape(L, N, E)
    attn = jnp.einsum('lne,fe->lnf', o, p['out_w']) + p['out_b'][0]
    x = _layer_norm(attn, p['g1'][0], p['b1'][0])
    h1 = jax.nn.relu(jnp.einsum('lne,fe->lnf', x, p['lin1_w']) + p['lin1_b'][0])
    ff = jnp.einsum('lnf,ef->lne', h1, p['lin2_w']) + p['lin2_b'][0]
    return _layer_norm(x + ff, p['g2'][0], p['b2'][0])


# ------------------------------------ main --------------------------------------
if __name__ == "__main__":
    key = jax.random.PRNGKey(0)
    ks = jax.random.split(key, 8)

    L, S, N, E = 8, 8, 2, D_MODEL

    src = jax.random.normal(ks[0], (L, N, E), dtype=jnp.float32)
    tar = jax.random.normal(ks[1], (S, N, E), dtype=jnp.float32)

    def w(k, shape, scale=0.05):
        return (scale * jax.random.normal(k, shape)).astype(jnp.float32)

    params = {
        'in_w':   w(ks[2], (3 * E, E)),
        'in_b':   w(ks[3], (1, 3 * E), scale=0.01),
        'out_w':  w(ks[4], (E, E)),
        'out_b':  jnp.zeros((1, E), jnp.float32),
        'lin1_w': w(ks[5], (DIM_FF, E)),
        'lin1_b': w(ks[6], (1, DIM_FF), scale=0.01),
        'lin2_w': w(ks[7], (E, DIM_FF)),
        'lin2_b': jnp.zeros((1, E), jnp.float32),
        'g1': jnp.ones((1, E), jnp.float32),  'b1': jnp.zeros((1, E), jnp.float32),
        'g2': jnp.ones((1, E), jnp.float32),  'b2': jnp.zeros((1, E), jnp.float32),
    }

    out = va_cross_encoder_layer(src, tar, params)
    out = jax.block_until_ready(out)

    ref = jax.block_until_ready(ref_forward(src, tar, params))
    # Exact softmax in-kernel (no approximate reciprocal) -> tight tolerance.
    np.testing.assert_allclose(np.asarray(out), np.asarray(ref),
                               rtol=1e-4, atol=1e-4)
    print("KERNEL_OK")
</pallas_src>

<mosaic_0001>
module attributes {stable_mosaic.version = 11 : i64} {
  func.func @encoder_layer_kernel(%arg0: i32, %arg1: memref<2x8x32xf32, #tpu.memory_space<vmem>>, %arg2: memref<2x8x32xf32, #tpu.memory_space<vmem>>, %arg3: memref<32x384xf32, #tpu.memory_space<vmem>>, %arg4: memref<64x32xf32, #tpu.memory_space<vmem>>, %arg5: memref<8x128xf32, #tpu.memory_space<vmem>>, %arg6: memref<16x32xf32, #tpu.memory_space<vmem>>) attributes {dimension_semantics = [#tpu.dimension_semantics<parallel>], iteration_bounds = array<i64: 1>, scalar_prefetch = 0 : i64, scratch_operands = 0 : i64, tpu.core_type = #tpu.core_type<tc>, window_params = [{transform_indices = @transform_0, window_bounds = array<i64: 2, 8, 32>}, {transform_indices = @transform_1, window_bounds = array<i64: 2, 8, 32>}, {pipeline_mode = #tpu.pipeline_mode<synchronous>, transform_indices = @transform_2, window_bounds = array<i64: 32, 384>}, {pipeline_mode = #tpu.pipeline_mode<synchronous>, transform_indices = @transform_3, window_bounds = array<i64: 64, 32>}, {pipeline_mode = #tpu.pipeline_mode<synchronous>, transform_indices = @transform_4, window_bounds = array<i64: 8, 128>}, {transform_indices = @transform_5, window_bounds = array<i64: 16, 32>}]} {
    %c0 = arith.constant 0 : index
    %c0_0 = arith.constant 0 : index
    %0 = vector.load %arg3[%c0, %c0_0] : memref<32x384xf32, #tpu.memory_space<vmem>>, vector<32x384xf32>
    %1 = vector.extract_strided_slice %0 {offsets = [0, 0], sizes = [32, 96], strides = [1, 1]} : vector<32x384xf32> to vector<32x96xf32>
    %2 = vector.extract_strided_slice %0 {offsets = [0, 128], sizes = [32, 32], strides = [1, 1]} : vector<32x384xf32> to vector<32x32xf32>
    %3 = vector.extract_strided_slice %0 {offsets = [0, 256], sizes = [32, 64], strides = [1, 1]} : vector<32x384xf32> to vector<32x64xf32>
    %c0_1 = arith.constant 0 : index
    %c0_2 = arith.constant 0 : index
    %4 = vector.load %arg4[%c0_1, %c0_2] : memref<64x32xf32, #tpu.memory_space<vmem>>, vector<64x32xf32>
    %c0_3 = arith.constant 0 : index
    %c0_4 = arith.constant 0 : index
    %5 = vector.load %arg5[%c0_3, %c0_4] : memref<8x128xf32, #tpu.memory_space<vmem>>, vector<8x128xf32>
    %6 = vector.extract_strided_slice %5 {offsets = [0, 0], sizes = [1, 96], strides = [1, 1]} : vector<8x128xf32> to vector<1x96xf32>
    %7 = vector.extract_strided_slice %5 {offsets = [1, 0], sizes = [1, 32], strides = [1, 1]} : vector<8x128xf32> to vector<1x32xf32>
    %8 = vector.extract_strided_slice %5 {offsets = [2, 0], sizes = [1, 64], strides = [1, 1]} : vector<8x128xf32> to vector<1x64xf32>
    %9 = vector.extract_strided_slice %5 {offsets = [3, 0], sizes = [1, 32], strides = [1, 1]} : vector<8x128xf32> to vector<1x32xf32>
    %10 = vector.extract_strided_slice %5 {offsets = [4, 0], sizes = [1, 32], strides = [1, 1]} : vector<8x128xf32> to vector<1x32xf32>
    %11 = vector.extract_strided_slice %5 {offsets = [5, 0], sizes = [1, 32], strides = [1, 1]} : vector<8x128xf32> to vector<1x32xf32>
    %12 = vector.extract_strided_slice %5 {offsets = [6, 0], sizes = [1, 32], strides = [1, 1]} : vector<8x128xf32> to vector<1x32xf32>
    %13 = vector.extract_strided_slice %5 {offsets = [7, 0], sizes = [1, 32], strides = [1, 1]} : vector<8x128xf32> to vector<1x32xf32>
    %c0_5 = arith.constant 0 : index
    %c0_6 = arith.constant 0 : index
    %c0_7 = arith.constant 0 : index
    %14 = vector.load %arg1[%c0_5, %c0_6, %c0_7] : memref<2x8x32xf32, #tpu.memory_space<vmem>>, vector<2x8x32xf32>
    %15 = vector.shape_cast %14 : vector<2x8x32xf32> to vector<16x32xf32>
    %c0_8 = arith.constant 0 : index
    %c0_9 = arith.constant 0 : index
    %c0_10 = arith.constant 0 : index
    %16 = vector.load %arg2[%c0_8, %c0_9, %c0_10] : memref<2x8x32xf32, #tpu.memory_space<vmem>>, vector<2x8x32xf32>
    %17 = vector.shape_cast %16 : vector<2x8x32xf32> to vector<16x32xf32>
    %18 = tpu.concatenate %15, %17 in 0 : vector<16x32xf32>, vector<16x32xf32> -> vector<32x32xf32>
    %cst = arith.constant dense<0.000000e+00> : vector<32x96xf32>
    %19 = tpu.matmul %18, %1, %cst {dimension_numbers = #tpu.dot_dimension_numbers<[1], [0], [0], [1], [0, 0, 1, 1], [], []>} : vector<32x32xf32>, vector<32x96xf32>, vector<32x96xf32> -> vector<32x96xf32>
    %20 = vector.broadcast %6 : vector<1x96xf32> to vector<32x96xf32>
    %21 = arith.addf %19, %20 : vector<32x96xf32>
    %22 = vector.extract_strided_slice %21 {offsets = [0, 0], sizes = [16, 32], strides = [1, 1]} : vector<32x96xf32> to vector<16x32xf32>
    %23 = vector.shape_cast %22 : vector<16x32xf32> to vector<2x8x32xf32>
    %24 = vector.extract_strided_slice %21 {offsets = [16, 32], sizes = [16, 32], strides = [1, 1]} : vector<32x96xf32> to vector<16x32xf32>
    %25 = vector.shape_cast %24 : vector<16x32xf32> to vector<2x8x32xf32>
    %26 = vector.extract_strided_slice %21 {offsets = [16, 64], sizes = [16, 32], strides = [1, 1]} : vector<32x96xf32> to vector<16x32xf32>
    %27 = vector.shape_cast %26 : vector<16x32xf32> to vector<2x8x32xf32>
    %28 = vector.extract_strided_slice %23 {offsets = [0, 0, 0], sizes = [2, 8, 8], strides = [1, 1, 1]} : vector<2x8x32xf32> to vector<2x8x8xf32>
    %29 = vector.extract_strided_slice %25 {offsets = [0, 0, 0], sizes = [2, 8, 8], strides = [1, 1, 1]} : vector<2x8x32xf32> to vector<2x8x8xf32>
    "tpu.trace_start"() <{level = 10 : i32, message = "bld,bsd->bls"}> : () -> ()
    %cst_11 = arith.constant dense<0.000000e+00> : vector<2x8x8xf32>
    %30 = tpu.matmul %28, %29, %cst_11 {dimension_numbers = #tpu.dot_dimension_numbers<[2], [2], [1], [1], [0, 0, 0, 1, 1, 1], [0], [0]>} : vector<2x8x8xf32>, vector<2x8x8xf32>, vector<2x8x8xf32> -> vector<2x8x8xf32>
    "tpu.trace_stop"() : () -> ()
    %31 = vector.extract_strided_slice %23 {offsets = [0, 0, 8], sizes = [2, 8, 8], strides = [1, 1, 1]} : vector<2x8x32xf32> to vector<2x8x8xf32>
    %32 = vector.extract_strided_slice %25 {offsets = [0, 0, 8], sizes = [2, 8, 8], strides = [1, 1, 1]} : vector<2x8x32xf32> to vector<2x8x8xf32>
    "tpu.trace_start"() <{level = 10 : i32, message = "bld,bsd->bls"}> : () -> ()
    %cst_12 = arith.constant dense<0.000000e+00> : vector<2x8x8xf32>
    %33 = tpu.matmul %31, %32, %cst_12 {dimension_numbers = #tpu.dot_dimension_numbers<[2], [2], [1], [1], [0, 0, 0, 1, 1, 1], [0], [0]>} : vector<2x8x8xf32>, vector<2x8x8xf32>, vector<2x8x8xf32> -> vector<2x8x8xf32>
    "tpu.trace_stop"() : () -> ()
    %34 = vector.extract_strided_slice %23 {offsets = [0, 0, 16], sizes = [2, 8, 8], strides = [1, 1, 1]} : vector<2x8x32xf32> to vector<2x8x8xf32>
    %35 = vector.extract_strided_slice %25 {offsets = [0, 0, 16], sizes = [2, 8, 8], strides = [1, 1, 1]} : vector<2x8x32xf32> to vector<2x8x8xf32>
    "tpu.trace_start"() <{level = 10 : i32, message = "bld,bsd->bls"}> : () -> ()
    %cst_13 = arith.constant dense<0.000000e+00> : vector<2x8x8xf32>
    %36 = tpu.matmul %34, %35, %cst_13 {dimension_numbers = #tpu.dot_dimension_numbers<[2], [2], [1], [1], [0, 0, 0, 1, 1, 1], [0], [0]>} : vector<2x8x8xf32>, vector<2x8x8xf32>, vector<2x8x8xf32> -> vector<2x8x8xf32>
    "tpu.trace_stop"() : () -> ()
    %37 = vector.extract_strided_slice %23 {offsets = [0, 0, 24], sizes = [2, 8, 8], strides = [1, 1, 1]} : vector<2x8x32xf32> to vector<2x8x8xf32>
    %38 = vector.extract_strided_slice %25 {offsets = [0, 0, 24], sizes = [2, 8, 8], strides = [1, 1, 1]} : vector<2x8x32xf32> to vector<2x8x8xf32>
    "tpu.trace_start"() <{level = 10 : i32, message = "bld,bsd->bls"}> : () -> ()
    %cst_14 = arith.constant dense<0.000000e+00> : vector<2x8x8xf32>
    %39 = tpu.matmul %37, %38, %cst_14 {dimension_numbers = #tpu.dot_dimension_numbers<[2], [2], [1], [1], [0, 0, 0, 1, 1, 1], [0], [0]>} : vector<2x8x8xf32>, vector<2x8x8xf32>, vector<2x8x8xf32> -> vector<2x8x8xf32>
    "tpu.trace_stop"() : () -> ()
    %40 = tpu.concatenate %30, %33, %36, %39 in 0 : vector<2x8x8xf32>, vector<2x8x8xf32>, vector<2x8x8xf32>, vector<2x8x8xf32> -> vector<8x8x8xf32>
    %cst_15 = arith.constant dense<0xFF800000> : vector<8x8xf32>
    %41 = vector.multi_reduction <maximumf>, %40, %cst_15 [2] : vector<8x8x8xf32> to vector<8x8xf32>
    %42 = vector.shape_cast %41 : vector<8x8xf32> to vector<8x8x1xf32>
    %43 = vector.broadcast %42 : vector<8x8x1xf32> to vector<8x8x8xf32>
    %44 = arith.subf %40, %43 : vector<8x8x8xf32>
    %45 = math.exp %44 : vector<8x8x8xf32>
    %cst_16 = arith.constant dense<0.000000e+00> : vector<8x8xf32>
    %46 = vector.multi_reduction <add>, %45, %cst_16 [2] : vector<8x8x8xf32> to vector<8x8xf32>
    %47 = vector.shape_cast %46 : vector<8x8xf32> to vector<8x8x1xf32>
    %48 = vector.broadcast %47 : vector<8x8x1xf32> to vector<8x8x8xf32>
    %49 = arith.divf %45, %48 : vector<8x8x8xf32>
    %50 = vector.extract_strided_slice %49 {offsets = [0, 0, 0], sizes = [2, 8, 8], strides = [1, 1, 1]} : vector<8x8x8xf32> to vector<2x8x8xf32>
    %51 = vector.extract_strided_slice %27 {offsets = [0, 0, 0], sizes = [2, 8, 8], strides = [1, 1, 1]} : vector<2x8x32xf32> to vector<2x8x8xf32>
    "tpu.trace_start"() <{level = 10 : i32, message = "bls,bsd->bld"}> : () -> ()
    %cst_17 = arith.constant dense<0.000000e+00> : vector<2x8x8xf32>
    %52 = tpu.matmul %50, %51, %cst_17 {dimension_numbers = #tpu.dot_dimension_numbers<[2], [1], [1], [2], [0, 0, 0, 1, 1, 2], [0], [0]>} : vector<2x8x8xf32>, vector<2x8x8xf32>, vector<2x8x8xf32> -> vector<2x8x8xf32>
    "tpu.trace_stop"() : () -> ()
    %53 = vector.shape_cast %52 : vector<2x8x8xf32> to vector<16x8xf32>
    %54 = vector.extract_strided_slice %2 {offsets = [0, 0], sizes = [8, 32], strides = [1, 1]} : vector<32x32xf32> to vector<8x32xf32>
    %cst_18 = arith.constant dense<0.000000e+00> : vector<16x32xf32>
    %55 = tpu.matmul %53, %54, %cst_18 {dimension_numbers = #tpu.dot_dimension_numbers<[1], [0], [0], [1], [0, 0, 1, 1], [], []>} : vector<16x8xf32>, vector<8x32xf32>, vector<16x32xf32> -> vector<16x32xf32>
    %56 = vector.extract_strided_slice %49 {offsets = [2, 0, 0], sizes = [2, 8, 8], strides = [1, 1, 1]} : vector<8x8x8xf32> to vector<2x8x8xf32>
    %57 = vector.extract_strided_slice %27 {offsets = [0, 0, 8], sizes = [2, 8, 8], strides = [1, 1, 1]} : vector<2x8x32xf32> to vector<2x8x8xf32>
    "tpu.trace_start"() <{level = 10 : i32, message = "bls,bsd->bld"}> : () -> ()
    %cst_19 = arith.constant dense<0.000000e+00> : vector<2x8x8xf32>
    %58 = tpu.matmul %56, %57, %cst_19 {dimension_numbers = #tpu.dot_dimension_numbers<[2], [1], [1], [2], [0, 0, 0, 1, 1, 2], [0], [0]>} : vector<2x8x8xf32>, vector<2x8x8xf32>, vector<2x8x8xf32> -> vector<2x8x8xf32>
    "tpu.trace_stop"() : () -> ()
    %59 = vector.shape_cast %58 : vector<2x8x8xf32> to vector<16x8xf32>
    %60 = vector.extract_strided_slice %2 {offsets = [8, 0], sizes = [8, 32], strides = [1, 1]} : vector<32x32xf32> to vector<8x32xf32>
    %cst_20 = arith.constant dense<0.000000e+00> : vector<16x32xf32>
    %61 = tpu.matmul %59, %60, %cst_20 {dimension_numbers = #tpu.dot_dimension_numbers<[1], [0], [0], [1], [0, 0, 1, 1], [], []>} : vector<16x8xf32>, vector<8x32xf32>, vector<16x32xf32> -> vector<16x32xf32>
    %62 = arith.addf %55, %61 : vector<16x32xf32>
    %63 = vector.extract_strided_slice %49 {offsets = [4, 0, 0], sizes = [2, 8, 8], strides = [1, 1, 1]} : vector<8x8x8xf32> to vector<2x8x8xf32>
    %64 = vector.extract_strided_slice %27 {offsets = [0, 0, 16], sizes = [2, 8, 8], strides = [1, 1, 1]} : vector<2x8x32xf32> to vector<2x8x8xf32>
    "tpu.trace_start"() <{level = 10 : i32, message = "bls,bsd->bld"}> : () -> ()
    %cst_21 = arith.constant dense<0.000000e+00> : vector<2x8x8xf32>
    %65 = tpu.matmul %63, %64, %cst_21 {dimension_numbers = #tpu.dot_dimension_numbers<[2], [1], [1], [2], [0, 0, 0, 1, 1, 2], [0], [0]>} : vector<2x8x8xf32>, vector<2x8x8xf32>, vector<2x8x8xf32> -> vector<2x8x8xf32>
    "tpu.trace_stop"() : () -> ()
    %66 = vector.shape_cast %65 : vector<2x8x8xf32> to vector<16x8xf32>
    %67 = vector.extract_strided_slice %2 {offsets = [16, 0], sizes = [8, 32], strides = [1, 1]} : vector<32x32xf32> to vector<8x32xf32>
    %cst_22 = arith.constant dense<0.000000e+00> : vector<16x32xf32>
    %68 = tpu.matmul %66, %67, %cst_22 {dimension_numbers = #tpu.dot_dimension_numbers<[1], [0], [0], [1], [0, 0, 1, 1], [], []>} : vector<16x8xf32>, vector<8x32xf32>, vector<16x32xf32> -> vector<16x32xf32>
    %69 = arith.addf %62, %68 : vector<16x32xf32>
    %70 = vector.extract_strided_slice %49 {offsets = [6, 0, 0], sizes = [2, 8, 8], strides = [1, 1, 1]} : vector<8x8x8xf32> to vector<2x8x8xf32>
    %71 = vector.extract_strided_slice %27 {offsets = [0, 0, 24], sizes = [2, 8, 8], strides = [1, 1, 1]} : vector<2x8x32xf32> to vector<2x8x8xf32>
    "tpu.trace_start"() <{level = 10 : i32, message = "bls,bsd->bld"}> : () -> ()
    %cst_23 = arith.constant dense<0.000000e+00> : vector<2x8x8xf32>
    %72 = tpu.matmul %70, %71, %cst_23 {dimension_numbers = #tpu.dot_dimension_numbers<[2], [1], [1], [2], [0, 0, 0, 1, 1, 2], [0], [0]>} : vector<2x8x8xf32>, vector<2x8x8xf32>, vector<2x8x8xf32> -> vector<2x8x8xf32>
    "tpu.trace_stop"() : () -> ()
    %73 = vector.shape_cast %72 : vector<2x8x8xf32> to vector<16x8xf32>
    %74 = vector.extract_strided_slice %2 {offsets = [24, 0], sizes = [8, 32], strides = [1, 1]} : vector<32x32xf32> to vector<8x32xf32>
    %cst_24 = arith.constant dense<0.000000e+00> : vector<16x32xf32>
    %75 = tpu.matmul %73, %74, %cst_24 {dimension_numbers = #tpu.dot_dimension_numbers<[1], [0], [0], [1], [0, 0, 1, 1], [], []>} : vector<16x8xf32>, vector<8x32xf32>, vector<16x32xf32> -> vector<16x32xf32>
    %76 = arith.addf %69, %75 : vector<16x32xf32>
    %77 = vector.broadcast %7 : vector<1x32xf32> to vector<16x32xf32>
    %78 = arith.addf %76, %77 : vector<16x32xf32>
    %cst_25 = arith.constant dense<0.000000e+00> : vector<16xf32>
    %79 = vector.multi_reduction <add>, %78, %cst_25 [1] : vector<16x32xf32> to vector<16xf32>
    %80 = vector.shape_cast %79 : vector<16xf32> to vector<16x1xf32>
    %cst_26 = arith.constant 3.200000e+01 : f32
    %81 = vector.broadcast %cst_26 : f32 to vector<16x1xf32>
    %82 = arith.divf %80, %81 : vector<16x1xf32>
    %83 = vector.broadcast %82 : vector<16x1xf32> to vector<16x32xf32>
    %84 = arith.subf %78, %83 : vector<16x32xf32>
    %85 = arith.mulf %84, %84 : vector<16x32xf32>
    %cst_27 = arith.constant dense<0.000000e+00> : vector<16xf32>
    %86 = vector.multi_reduction <add>, %85, %cst_27 [1] : vector<16x32xf32> to vector<16xf32>
    %87 = vector.shape_cast %86 : vector<16xf32> to vector<16x1xf32>
    %cst_28 = arith.constant 3.200000e+01 : f32
    %88 = vector.broadcast %cst_28 : f32 to vector<16x1xf32>
    %89 = arith.divf %87, %88 : vector<16x1xf32>
    %90 = vector.broadcast %82 : vector<16x1xf32> to vector<16x32xf32>
    %91 = arith.subf %78, %90 : vector<16x32xf32>
    %cst_29 = arith.constant 9.99999974E-6 : f32
    %92 = vector.broadcast %cst_29 : f32 to vector<16x1xf32>
    %93 = arith.addf %89, %92 : vector<16x1xf32>
    %94 = math.rsqrt %93 : vector<16x1xf32>
    %95 = vector.broadcast %94 : vector<16x1xf32> to vector<16x32xf32>
    %96 = arith.mulf %91, %95 : vector<16x32xf32>
    %97 = vector.broadcast %10 : vector<1x32xf32> to vector<16x32xf32>
    %98 = arith.mulf %96, %97 : vector<16x32xf32>
    %99 = vector.broadcast %11 : vector<1x32xf32> to vector<16x32xf32>
    %100 = arith.addf %98, %99 : vector<16x32xf32>
    %cst_30 = arith.constant dense<0.000000e+00> : vector<16x64xf32>
    %101 = tpu.matmul %100, %3, %cst_30 {dimension_numbers = #tpu.dot_dimension_numbers<[1], [0], [0], [1], [0, 0, 1, 1], [], []>} : vector<16x32xf32>, vector<32x64xf32>, vector<16x64xf32> -> vector<16x64xf32>
    %102 = vector.broadcast %8 : vector<1x64xf32> to vector<16x64xf32>
    %103 = arith.addf %101, %102 : vector<16x64xf32>
    %cst_31 = arith.constant 0.000000e+00 : f32
    %104 = vector.broadcast %cst_31 : f32 to vector<16x64xf32>
    %105 = arith.maximumf %103, %104 : vector<16x64xf32>
    %cst_32 = arith.constant dense<0.000000e+00> : vector<16x32xf32>
    %106 = tpu.matmul %105, %4, %cst_32 {dimension_numbers = #tpu.dot_dimension_numbers<[1], [0], [0], [1], [0, 0, 1, 1], [], []>} : vector<16x64xf32>, vector<64x32xf32>, vector<16x32xf32> -> vector<16x32xf32>
    %107 = vector.broadcast %9 : vector<1x32xf32> to vector<16x32xf32>
    %108 = arith.addf %106, %107 : vector<16x32xf32>
    %109 = arith.addf %100, %108 : vector<16x32xf32>
    %cst_33 = arith.constant dense<0.000000e+00> : vector<16xf32>
    %110 = vector.multi_reduction <add>, %109, %cst_33 [1] : vector<16x32xf32> to vector<16xf32>
    %111 = vector.shape_cast %110 : vector<16xf32> to vector<16x1xf32>
    %cst_34 = arith.constant 3.200000e+01 : f32
    %112 = vector.broadcast %cst_34 : f32 to vector<16x1xf32>
    %113 = arith.divf %111, %112 : vector<16x1xf32>
    %114 = vector.broadcast %113 : vector<16x1xf32> to vector<16x32xf32>
    %115 = arith.subf %109, %114 : vector<16x32xf32>
    %116 = arith.mulf %115, %115 : vector<16x32xf32>
    %cst_35 = arith.constant dense<0.000000e+00> : vector<16xf32>
    %117 = vector.multi_reduction <add>, %116, %cst_35 [1] : vector<16x32xf32> to vector<16xf32>
    %118 = vector.shape_cast %117 : vector<16xf32> to vector<16x1xf32>
    %cst_36 = arith.constant 3.200000e+01 : f32
    %119 = vector.broadcast %cst_36 : f32 to vector<16x1xf32>
    %120 = arith.divf %118, %119 : vector<16x1xf32>
    %121 = vector.broadcast %113 : vector<16x1xf32> to vector<16x32xf32>
    %122 = arith.subf %109, %121 : vector<16x32xf32>
    %cst_37 = arith.constant 9.99999974E-6 : f32
    %123 = vector.broadcast %cst_37 : f32 to vector<16x1xf32>
    %124 = arith.addf %120, %123 : vector<16x1xf32>
    %125 = math.rsqrt %124 : vector<16x1xf32>
    %126 = vector.broadcast %125 : vector<16x1xf32> to vector<16x32xf32>
    %127 = arith.mulf %122, %126 : vector<16x32xf32>
    %128 = vector.broadcast %12 : vector<1x32xf32> to vector<16x32xf32>
    %129 = arith.mulf %127, %128 : vector<16x32xf32>
    %130 = vector.broadcast %13 : vector<1x32xf32> to vector<16x32xf32>
    %131 = arith.addf %129, %130 : vector<16x32xf32>
    %c0_38 = arith.constant 0 : index
    %c0_39 = arith.constant 0 : index
    %132 = vector.load %arg6[%c0_38, %c0_39] : memref<16x32xf32, #tpu.memory_space<vmem>>, vector<16x32xf32>
    tpu.vector_store %arg6[%c0_38, %c0_39], %131 {strides = array<i32>} : memref<16x32xf32, #tpu.memory_space<vmem>>, vector<16x32xf32>,
    return
  }
  func.func @transform_0(%arg0: i32) -> (i32, i32, i32) {
    %c0_i32 = arith.constant 0 : i32
    %c0_i32_0 = arith.constant 0 : i32
    %c0_i32_1 = arith.constant 0 : i32
    return %arg0, %c0_i32, %c0_i32_0 : i32, i32, i32
  }
  func.func @transform_1(%arg0: i32) -> (i32, i32, i32) {
    %c0_i32 = arith.constant 0 : i32
    %c0_i32_0 = arith.constant 0 : i32
    %c0_i32_1 = arith.constant 0 : i32
    return %arg0, %c0_i32, %c0_i32_0 : i32, i32, i32
  }
  func.func @transform_2(%arg0: i32) -> (i32, i32) {
    %c0_i32 = arith.constant 0 : i32
    %c0_i32_0 = arith.constant 0 : i32
    %c0_i32_1 = arith.constant 0 : i32
    return %c0_i32, %c0_i32_0 : i32, i32
  }
  func.func @transform_3(%arg0: i32) -> (i32, i32) {
    %c0_i32 = arith.constant 0 : i32
    %c0_i32_0 = arith.constant 0 : i32
    %c0_i32_1 = arith.constant 0 : i32
    return %c0_i32, %c0_i32_0 : i32, i32
  }
  func.func @transform_4(%arg0: i32) -> (i32, i32) {
    %c0_i32 = arith.constant 0 : i32
    %c0_i32_0 = arith.constant 0 : i32
    %c0_i32_1 = arith.constant 0 : i32
    return %c0_i32, %c0_i32_0 : i32, i32
  }
  func.func @transform_5(%arg0: i32) -> (i32, i32) {
    %c0_i32 = arith.constant 0 : i32
    %c0_i32_0 = arith.constant 0 : i32
    return %arg0, %c0_i32 : i32, i32
  }
}

</mosaic_0001>

<llo_original>
// kernel: tpu_custom_call.1
$region0: #{tpu_custom_call.1}
  #allocation0 [shape = 'u32[]', space=smem, size = 0x4, offset = 0x4, fixed_abs, tag = 'smem constant byte address 0x4 - core index']
  #allocation1 [shape = 'u32[144,128]{1,0:T(1,128)}', space=vmem, size = 0x12000, scoped, tag = 'internal scratch']
  %s0 = inlined_call_operand.hbm [shape: f32[2,8,32], index: 0, kind: input, shape index: {}]
  %s1 = inlined_call_operand.hbm [shape: f32[2,8,32], index: 1, kind: input, shape index: {}]
  %s2 = inlined_call_operand.vmem [shape: f32[32,384], index: 2, kind: input, shape index: {}]
  %s3 = inlined_call_operand.vmem [shape: f32[64,32], index: 3, kind: input, shape index: {}]
  %s4 = inlined_call_operand.hbm [shape: f32[8,128], index: 4, kind: input, shape index: {}]
  %s5 = inlined_call_operand.hbm [shape: f32[16,32], index: 5, kind: output, shape index: {}]
  %s6 = sld [smem:[#allocation0]]
  $region42: #{tpu_custom_call.1} parent=0
    _
  %s8 = ssub.s32 1, %s6
  %s9 = scalar_select 0, %s8, %s6
  $region1: #{tpu_custom_call.1} parent=0
    #allocation2 [shape = 'u8[8192]{0}', space=vmem, size = 0x2000, scoped, tag = 'input window, operand 0, single buffered']
    #allocation3 [shape = 's32[1]{0}', space=sflag, size = 0x4, scoped, tag = 'scoped memory for tpu_custom_call.1']
    #allocation4 [shape = 's32[1]{0}', space=sflag, size = 0x4, scoped, tag = 'scoped memory for tpu_custom_call.1']
    #allocation5 [shape = 'u8[8192]{0}', space=vmem, size = 0x2000, scoped, tag = 'input window, operand 1, single buffered']
    #allocation6 [shape = 's32[1]{0}', space=sflag, size = 0x4, scoped, tag = 'scoped memory for tpu_custom_call.1']
    #allocation7 [shape = 'u8[4096]{0}', space=vmem, size = 0x1000, scoped, tag = 'input window, operand 4, single buffered']
    #allocation8 [shape = 'u8[8192]{0}', space=vmem, size = 0x2000, scoped, tag = 'output window, operand 0, single buffered']
    %10 = vsyncpa [#allocation3], 0
    %11 = vsyncpa [#allocation6], 0
    %12 = vsyncpa [#allocation4], 0
    // Predicated region
    $region2: #{tpu_custom_call.1} parent=1 // pred_check
      _
    $region3: #{tpu_custom_call.1} parent=1 // pred_check_branch
      %14 = sbr.rel (0) target = $region5
    $region4: #{tpu_custom_call.1} parent=1 // pred_region
      %s16 = ssub.s32 256, 256
      %17 = vsyncadd [#allocation3], %s16
      %s18 = sshll.u32 [#allocation2], 4
      %s19 = int_to_ptr.vmem [resolvable:$true] %s18
      %24 = dma.hbm_to_vmem [thread:$0]  %s0, 256, %s19, [#allocation3], 128, 128, 8
    $region5: #{tpu_custom_call.1} parent=1 // pred_fallthru
      _
    // Predicated region
    $region6: #{tpu_custom_call.1} parent=1 // pred_check
      _
    $region7: #{tpu_custom_call.1} parent=1 // pred_check_branch
      %26 = sbr.rel (0) target = $region9
    $region8: #{tpu_custom_call.1} parent=1 // pred_region
      %s28 = ssub.s32 256, 256
      %29 = vsyncadd [#allocation6], %s28
      %s30 = sshll.u32 [#allocation5], 4
      %s31 = int_to_ptr.vmem [resolvable:$true] %s30
      %36 = dma.hbm_to_vmem [thread:$0]  %s1, 256, %s31, [#allocation6], 128, 128, 8
    $region9: #{tpu_custom_call.1} parent=1 // pred_fallthru
      _
    // Predicated region
    $region10: #{tpu_custom_call.1} parent=1 // pred_check
      _
    $region11: #{tpu_custom_call.1} parent=1 // pred_check_branch
      %38 = sbr.rel (0) target = $region13
    $region12: #{tpu_custom_call.1} parent=1 // pred_region
      _
    $region13: #{tpu_custom_call.1} parent=1 // pred_fallthru
      _
    // Predicated region
    $region14: #{tpu_custom_call.1} parent=1 // pred_check
      _
    $region15: #{tpu_custom_call.1} parent=1 // pred_check_branch
      %40 = sbr.rel (0) target = $region17
    $region16: #{tpu_custom_call.1} parent=1 // pred_region
      _
    $region17: #{tpu_custom_call.1} parent=1 // pred_fallthru
      _
    // Predicated region
    $region18: #{tpu_custom_call.1} parent=1 // pred_check
      _
    $region19: #{tpu_custom_call.1} parent=1 // pred_check_branch
      %42 = sbr.rel (0) target = $region21
    $region20: #{tpu_custom_call.1} parent=1 // pred_region
      %s44 = ssub.s32 128, 128
      %45 = vsyncadd [#allocation6], %s44
      %s47 = sshll.u32 [#allocation7], 4
      %s48 = int_to_ptr.vmem [resolvable:$true] %s47
      %50 = dma.hbm_to_vmem [thread:$0]  %s4, 128, %s48, [#allocation6]
    $region21: #{tpu_custom_call.1} parent=1 // pred_fallthru
      _
    // Predicated region
    $region22: #{tpu_custom_call.1} parent=1 // pred_check
      _
    $region23: #{tpu_custom_call.1} parent=1 // pred_check_branch
      %52 = sbr.rel (0) target = $region25
    $region24: #{tpu_custom_call.1} parent=1 // pred_region
      %53 = dma.done [#allocation3], 256
    $region25: #{tpu_custom_call.1} parent=1 // pred_fallthru
      _
    // Predicated region
    $region26: #{tpu_custom_call.1} parent=1 // pred_check
      _
    $region27: #{tpu_custom_call.1} parent=1 // pred_check_branch
      %55 = sbr.rel (0) target = $region29
    $region28: #{tpu_custom_call.1} parent=1 // pred_region
      %56 = dma.done [#allocation6], 256
    $region29: #{tpu_custom_call.1} parent=1 // pred_fallthru
      _
    // Predicated region
    $region30: #{tpu_custom_call.1} parent=1 // pred_check
      _
    $region31: #{tpu_custom_call.1} parent=1 // pred_check_branch
      %58 = sbr.rel (0) target = $region33
    $region32: #{tpu_custom_call.1} parent=1 // pred_region
      %59 = dma.done [#allocation6], 128
    $region33: #{tpu_custom_call.1} parent=1 // pred_fallthru
      _
    %v60 = vld [vmem:[%s2] sm:$0xff]
    %v61 = vld [vmem:[%s2 + $0x8] sm:$0xff]
    %v62 = vld [vmem:[%s2 + $0x10] sm:$0xff]
    %v63 = vld [vmem:[%s2 + $0x18] sm:$0xff]
    %v64 = vld [vmem:[%s2 + $0x20] sm:$0xff]
    %v65 = vld [vmem:[%s2 + $0x28] sm:$0xff]
    %v66 = vld [vmem:[%s2 + $0x30] sm:$0xff]
    %v67 = vld [vmem:[%s2 + $0x38] sm:$0xff]
    %v68 = vld [vmem:[%s2 + $0x40] sm:$0xff]
    %v69 = vld [vmem:[%s2 + $0x48] sm:$0xff]
    %v70 = vld [vmem:[%s2 + $0x50] sm:$0xff]
    %v71 = vld [vmem:[%s2 + $0x58] sm:$0xff]
    %v72 = vld [vmem:[%s3] sm:$0xff]
    %v73 = vld [vmem:[%s3 + $0x8] sm:$0xff]
    %v74 = vld [vmem:[%s3 + $0x10] sm:$0xff]
    %v75 = vld [vmem:[%s3 + $0x18] sm:$0xff]
    %v76 = vld [vmem:[%s3 + $0x20] sm:$0xff]
    %v77 = vld [vmem:[%s3 + $0x28] sm:$0xff]
    %v78 = vld [vmem:[%s3 + $0x30] sm:$0xff]
    %v79 = vld [vmem:[%s3 + $0x38] sm:$0xff]
    %v80 = vld [vmem:[#allocation7] sm:$0xff]
    %v81 = vld [vmem:[#allocation2] sm:$0xff]
    %v82 = vld [vmem:[#allocation2 + $0x8] sm:$0xff]
    %v83 = vld [vmem:[#allocation5] sm:$0xff]
    %v84 = vld [vmem:[#allocation5 + $0x8] sm:$0xff]
    %v85 = vlaneseq
    %v86 = vshrl.u32 %v85, 7
    %v87 = vsub.s32 0, %v86
    %v88 = vrot.slane %v80, %v87
    %vm89 = vcmask 261120
    %v91 = vsel %vm89, %v81, 0
    %v94 = vsel %vm89, %v82, 0
    %v97 = vsel %vm89, %v83, 0
    %v100 = vsel %vm89, %v84, 0
    %102 = vmatprep.subr.mxu0 0.0
    %103 = vmatpush1.msra.mxu0 0.0
    %104 = vmatprep.subr.mxu0 0.0
    %105 = vmatpush1.msra.mxu0 0.0
    %106 = vmatprep.subr.mxu0 0.0
    %107 = vmatpush1.msra.mxu0 0.0
    %108 = vmatprep.subr.mxu0 0.0
    %109 = vmatpush1.msra.mxu0 0.0
    %110 = vmatprep.subr.mxu0 0.0
    %111 = vmatpush1.msra.mxu0 0.0
    %112 = vmatprep.subr.mxu0 0.0
    %113 = vmatpush1.msra.mxu0 0.0
    %114 = vmatprep.subr.mxu0 0.0
    %115 = vmatpush1.msra.mxu0 0.0
    %116 = vmatprep.subr.mxu0 0.0
    %117 = vmatpush1.msra.mxu0 0.0
    %118 = vmatprep.subr.mxu0 0.0
    %119 = vmatpush1.msra.mxu0 0.0
    %120 = vmatprep.subr.mxu0 0.0
    %121 = vmatpush1.msra.mxu0 0.0
    %122 = vmatprep.subr.mxu0 0.0
    %123 = vmatpush1.msra.mxu0 0.0
    %124 = vmatprep.subr.mxu0 0.0
    %125 = vmatpush1.msra.mxu0 0.0
    %126 = vmatprep.subr.mxu0 0.0
    %127 = vmatpush1.msra.mxu0 %v69
    %128 = vmatprep.subr.mxu0 0.0
    %129 = vmatpush1.msra.mxu0 %v66
    %130 = vmatprep.subr.mxu0 0.0
    %131 = vmatpush1.msra.mxu0 %v63
    %132 = vmatprep.subr.mxu0 0.0
    %133 = vmatpush1.msra.mxu0 %v60
    %134 = vmatprep.subr.mxu0 0.0
    %135 = vmatpush2.msra.mxu0 0.0
    %136 = vmatprep.subr.mxu0 0.0
    %137 = vmatpush2.msra.mxu0 0.0
    %138 = vmatprep.subr.mxu0 0.0
    %139 = vmatpush2.msra.mxu0 0.0
    %140 = vmatprep.subr.mxu0 0.0
    %141 = vmatpush2.msra.mxu0 0.0
    %142 = vmatprep.subr.mxu0 0.0
    %143 = vmatpush2.msra.mxu0 0.0
    %144 = vmatprep.subr.mxu0 0.0
    %145 = vmatpush2.msra.mxu0 0.0
    %146 = vmatprep.subr.mxu0 0.0
    %147 = vmatpush2.msra.mxu0 0.0
    %148 = vmatprep.subr.mxu0 0.0
    %149 = vmatpush2.msra.mxu0 0.0
    %150 = vmatprep.subr.mxu0 0.0
    %151 = vmatpush2.msra.mxu0 0.0
    %152 = vmatprep.subr.mxu0 0.0
    %153 = vmatpush2.msra.mxu0 0.0
    %154 = vmatprep.subr.mxu0 0.0
    %155 = vmatpush2.msra.mxu0 0.0
    %156 = vmatprep.subr.mxu0 0.0
    %157 = vmatpush2.msra.mxu0 0.0
    %158 = vmatprep.subr.mxu0 0.0
    %159 = vmatpush2.msra.mxu0 0.0
    %160 = vmatprep.subr.mxu0 0.0
    %161 = vmatpush2.msra.mxu0 0.0
    %162 = vmatprep.subr.mxu0 0.0
    %163 = vmatpush2.msra.mxu0 0.0
    %164 = vmatprep.subr.mxu0 0.0
    %165 = vmatpush2.msra.mxu0 0.0
    %166 = vmatprep.mubr.f32.mxu0 0.0
    %167 = vmatmul.mubr.f32.gmra.mxu0 %v91
    %v168 = vpop.f32.mrf.mxu0
    %v169 = vadd.f32 %v88, %v168
    %v170 = vpop.f32.mrf.mxu0
    %171 = vmatprep.mubr.f32.mxu0 0.0
    %172 = vmatmul.mubr.f32.gmra.mxu0 %v94
    %v173 = vpop.f32.mrf.mxu0
    %v174 = vadd.f32 %v88, %v173
    %v175 = vpop.f32.mrf.mxu0
    %176 = vmatprep.mubr.f32.mxu0 0.0
    %177 = vmatmul.mubr.f32.gmra.mxu0 %v97
    %v178 = vpop.f32.mrf.mxu0
    %v179 = vadd.f32 %v88, %v178
    %v180 = vpop.f32.mrf.mxu0
    %181 = vmatprep.mubr.f32.mxu0 0.0
    %182 = vmatmul.mubr.f32.gmra.mxu0 %v100
    %v183 = vpop.f32.mrf.mxu0
    %v184 = vadd.f32 %v88, %v183
    %v185 = vpop.f32.mrf.mxu0
    %186 = vdwg.mxu0
    %188 = vrot.lane.b32.xlu0 %v179, 96
    %v189 = vpop.permute.xlu0 %188
    %vm190 = vcmask 64512
    %v192 = vsel %vm190, %v169, 0
    %v194 = vsel %vm190, %v189, 0
    %196 = vmatprep.subr.mxu0 0.0
    %197 = vmatpush1.xpose.msra.mxu0 0.0
    %198 = vmatprep.subr.mxu0 0.0
    %199 = vmatpush1.xpose.msra.mxu0 0.0
    %200 = vmatprep.subr.mxu0 0.0
    %201 = vmatpush1.xpose.msra.mxu0 0.0
    %202 = vmatprep.subr.mxu0 0.0
    %203 = vmatpush1.xpose.msra.mxu0 0.0
    %204 = vmatprep.subr.mxu0 0.0
    %205 = vmatpush1.xpose.msra.mxu0 0.0
    %206 = vmatprep.subr.mxu0 0.0
    %207 = vmatpush1.xpose.msra.mxu0 0.0
    %208 = vmatprep.subr.mxu0 0.0
    %209 = vmatpush1.xpose.msra.mxu0 0.0
    %210 = vmatprep.subr.mxu0 0.0
    %211 = vmatpush1.xpose.msra.mxu0 0.0
    %212 = vmatprep.subr.mxu0 0.0
    %213 = vmatpush1.xpose.msra.mxu0 0.0
    %214 = vmatprep.subr.mxu0 0.0
    %215 = vmatpush1.xpose.msra.mxu0 0.0
    %216 = vmatprep.subr.mxu0 0.0
    %217 = vmatpush1.xpose.msra.mxu0 0.0
    %218 = vmatprep.subr.mxu0 0.0
    %219 = vmatpush1.xpose.msra.mxu0 0.0
    %220 = vmatprep.subr.mxu0 0.0
    %221 = vmatpush1.xpose.msra.mxu0 0.0
    %222 = vmatprep.subr.mxu0 0.0
    %223 = vmatpush1.xpose.msra.mxu0 0.0
    %224 = vmatprep.subr.mxu0 0.0
    %225 = vmatpush1.xpose.msra.mxu0 0.0
    %226 = vmatprep.subr.mxu0 0.0
    %227 = vmatpush1.xpose.msra.mxu0 %v194
    %228 = vmatprep.subr.mxu0 0.0
    %229 = vmatpush2.xpose.msra.mxu0 0.0
    %230 = vmatprep.subr.mxu0 0.0
    %231 = vmatpush2.xpose.msra.mxu0 0.0
    %232 = vmatprep.subr.mxu0 0.0
    %233 = vmatpush2.xpose.msra.mxu0 0.0
    %234 = vmatprep.subr.mxu0 0.0
    %235 = vmatpush2.xpose.msra.mxu0 0.0
    %236 = vmatprep.subr.mxu0 0.0
    %237 = vmatpush2.xpose.msra.mxu0 0.0
    %238 = vmatprep.subr.mxu0 0.0
    %239 = vmatpush2.xpose.msra.mxu0 0.0
    %240 = vmatprep.subr.mxu0 0.0
    %241 = vmatpush2.xpose.msra.mxu0 0.0
    %242 = vmatprep.subr.mxu0 0.0
    %243 = vmatpush2.xpose.msra.mxu0 0.0
    %244 = vmatprep.subr.mxu0 0.0
    %245 = vmatpush2.xpose.msra.mxu0 0.0
    %246 = vmatprep.subr.mxu0 0.0
    %247 = vmatpush2.xpose.msra.mxu0 0.0
    %248 = vmatprep.subr.mxu0 0.0
    %249 = vmatpush2.xpose.msra.mxu0 0.0
    %250 = vmatprep.subr.mxu0 0.0
    %251 = vmatpush2.xpose.msra.mxu0 0.0
    %252 = vmatprep.subr.mxu0 0.0
    %253 = vmatpush2.xpose.msra.mxu0 0.0
    %254 = vmatprep.subr.mxu0 0.0
    %255 = vmatpush2.xpose.msra.mxu0 0.0
    %256 = vmatprep.subr.mxu0 0.0
    %257 = vmatpush2.xpose.msra.mxu0 0.0
    %258 = vmatprep.subr.mxu0 0.0
    %259 = vmatpush2.xpose.msra.mxu0 0.0
    %260 = vmatprep.mubr.f32.mxu0 0.0
    %261 = vmatmul.mubr.f32.gmra.mxu0 %v192
    %v262 = vpop.f32.mrf.mxu0
    %v263 = vadd.f32 0.0, %v262
    %v264 = vpop.f32.mrf.mxu0
    %265 = vdwg.mxu0
    %267 = vrot.lane.b32.xlu0 %v184, 96
    %v268 = vpop.permute.xlu0 %267
    %v270 = vsel %vm190, %v174, 0
    %v272 = vsel %vm190, %v268, 0
    %274 = vmatprep.subr.mxu0 0.0
    %275 = vmatpush1.xpose.msra.mxu0 0.0
    %276 = vmatprep.subr.mxu0 0.0
    %277 = vmatpush1.xpose.msra.mxu0 0.0
    %278 = vmatprep.subr.mxu0 0.0
    %279 = vmatpush1.xpose.msra.mxu0 0.0
    %280 = vmatprep.subr.mxu0 0.0
    %281 = vmatpush1.xpose.msra.mxu0 0.0
    %282 = vmatprep.subr.mxu0 0.0
    %283 = vmatpush1.xpose.msra.mxu0 0.0
    %284 = vmatprep.subr.mxu0 0.0
    %285 = vmatpush1.xpose.msra.mxu0 0.0
    %286 = vmatprep.subr.mxu0 0.0
    %287 = vmatpush1.xpose.msra.mxu0 0.0
    %288 = vmatprep.subr.mxu0 0.0
    %289 = vmatpush1.xpose.msra.mxu0 0.0
    %290 = vmatprep.subr.mxu0 0.0
    %291 = vmatpush1.xpose.msra.mxu0 0.0
    %292 = vmatprep.subr.mxu0 0.0
    %293 = vmatpush1.xpose.msra.mxu0 0.0
    %294 = vmatprep.subr.mxu0 0.0
    %295 = vmatpush1.xpose.msra.mxu0 0.0
    %296 = vmatprep.subr.mxu0 0.0
    %297 = vmatpush1.xpose.msra.mxu0 0.0
    %298 = vmatprep.subr.mxu0 0.0
    %299 = vmatpush1.xpose.msra.mxu0 0.0
    %300 = vmatprep.subr.mxu0 0.0
    %301 = vmatpush1.xpose.msra.mxu0 0.0
    %302 = vmatprep.subr.mxu0 0.0
    %303 = vmatpush1.xpose.msra.mxu0 0.0
    %304 = vmatprep.subr.mxu0 0.0
    %305 = vmatpush1.xpose.msra.mxu0 %v272
    %306 = vmatprep.subr.mxu0 0.0
    %307 = vmatpush2.xpose.msra.mxu0 0.0
    %308 = vmatprep.subr.mxu0 0.0
    %309 = vmatpush2.xpose.msra.mxu0 0.0
    %310 = vmatprep.subr.mxu0 0.0
    %311 = vmatpush2.xpose.msra.mxu0 0.0
    %312 = vmatprep.subr.mxu0 0.0
    %313 = vmatpush2.xpose.msra.mxu0 0.0
    %314 = vmatprep.subr.mxu0 0.0
    %315 = vmatpush2.xpose.msra.mxu0 0.0
    %316 = vmatprep.subr.mxu0 0.0
    %317 = vmatpush2.xpose.msra.mxu0 0.0
    %318 = vmatprep.subr.mxu0 0.0
    %319 = vmatpush2.xpose.msra.mxu0 0.0
    %320 = vmatprep.subr.mxu0 0.0
    %321 = vmatpush2.xpose.msra.mxu0 0.0
    %322 = vmatprep.subr.mxu0 0.0
    %323 = vmatpush2.xpose.msra.mxu0 0.0
    %324 = vmatprep.subr.mxu0 0.0
    %325 = vmatpush2.xpose.msra.mxu0 0.0
    %326 = vmatprep.subr.mxu0 0.0
    %327 = vmatpush2.xpose.msra.mxu0 0.0
    %328 = vmatprep.subr.mxu0 0.0
    %329 = vmatpush2.xpose.msra.mxu0 0.0
    %330 = vmatprep.subr.mxu0 0.0
    %331 = vmatpush2.xpose.msra.mxu0 0.0
    %332 = vmatprep.subr.mxu0 0.0
    %333 = vmatpush2.xpose.msra.mxu0 0.0
    %334 = vmatprep.subr.mxu0 0.0
    %335 = vmatpush2.xpose.msra.mxu0 0.0
    %336 = vmatprep.subr.mxu0 0.0
    %337 = vmatpush2.xpose.msra.mxu0 0.0
    %338 = vmatprep.mubr.f32.mxu0 0.0
    %339 = vmatmul.mubr.f32.gmra.mxu0 %v270
    %v340 = vpop.f32.mrf.mxu0
    %v341 = vadd.f32 0.0, %v340
    %v342 = vpop.f32.mrf.mxu0
    %343 = vdwg.mxu0
    %344 = vrot.lane.b32.xlu0 %v169, 120
    %v345 = vpop.permute.xlu0 %344
    %346 = vrot.lane.b32.xlu0 %v179, 88
    %v347 = vpop.permute.xlu0 %346
    %v348 = vsel %vm190, %v345, 0
    %v350 = vsel %vm190, %v347, 0
    %352 = vmatprep.subr.mxu0 0.0
    %353 = vmatpush1.xpose.msra.mxu0 0.0
    %354 = vmatprep.subr.mxu0 0.0
    %355 = vmatpush1.xpose.msra.mxu0 0.0
    %356 = vmatprep.subr.mxu0 0.0
    %357 = vmatpush1.xpose.msra.mxu0 0.0
    %358 = vmatprep.subr.mxu0 0.0
    %359 = vmatpush1.xpose.msra.mxu0 0.0
    %360 = vmatprep.subr.mxu0 0.0
    %361 = vmatpush1.xpose.msra.mxu0 0.0
    %362 = vmatprep.subr.mxu0 0.0
    %363 = vmatpush1.xpose.msra.mxu0 0.0
    %364 = vmatprep.subr.mxu0 0.0
    %365 = vmatpush1.xpose.msra.mxu0 0.0
    %366 = vmatprep.subr.mxu0 0.0
    %367 = vmatpush1.xpose.msra.mxu0 0.0
    %368 = vmatprep.subr.mxu0 0.0
    %369 = vmatpush1.xpose.msra.mxu0 0.0
    %370 = vmatprep.subr.mxu0 0.0
    %371 = vmatpush1.xpose.msra.mxu0 0.0
    %372 = vmatprep.subr.mxu0 0.0
    %373 = vmatpush1.xpose.msra.mxu0 0.0
    %374 = vmatprep.subr.mxu0 0.0
    %375 = vmatpush1.xpose.msra.mxu0 0.0
    %376 = vmatprep.subr.mxu0 0.0
    %377 = vmatpush1.xpose.msra.mxu0 0.0
    %378 = vmatprep.subr.mxu0 0.0
    %379 = vmatpush1.xpose.msra.mxu0 0.0
    %380 = vmatprep.subr.mxu0 0.0
    %381 = vmatpush1.xpose.msra.mxu0 0.0
    %382 = vmatprep.subr.mxu0 0.0
    %383 = vmatpush1.xpose.msra.mxu0 %v350
    %384 = vmatprep.subr.mxu0 0.0
    %385 = vmatpush2.xpose.msra.mxu0 0.0
    %386 = vmatprep.subr.mxu0 0.0
    %387 = vmatpush2.xpose.msra.mxu0 0.0
    %388 = vmatprep.subr.mxu0 0.0
    %389 = vmatpush2.xpose.msra.mxu0 0.0
    %390 = vmatprep.subr.mxu0 0.0
    %391 = vmatpush2.xpose.msra.mxu0 0.0
    %392 = vmatprep.subr.mxu0 0.0
    %393 = vmatpush2.xpose.msra.mxu0 0.0
    %394 = vmatprep.subr.mxu0 0.0
    %395 = vmatpush2.xpose.msra.mxu0 0.0
    %396 = vmatprep.subr.mxu0 0.0
    %397 = vmatpush2.xpose.msra.mxu0 0.0
    %398 = vmatprep.subr.mxu0 0.0
    %399 = vmatpush2.xpose.msra.mxu0 0.0
    %400 = vmatprep.subr.mxu0 0.0
    %401 = vmatpush2.xpose.msra.mxu0 0.0
    %402 = vmatprep.subr.mxu0 0.0
    %403 = vmatpush2.xpose.msra.mxu0 0.0
    %404 = vmatprep.subr.mxu0 0.0
    %405 = vmatpush2.xpose.msra.mxu0 0.0
    %406 = vmatprep.subr.mxu0 0.0
    %407 = vmatpush2.xpose.msra.mxu0 0.0
    %408 = vmatprep.subr.mxu0 0.0
    %409 = vmatpush2.xpose.msra.mxu0 0.0
    %410 = vmatprep.subr.mxu0 0.0
    %411 = vmatpush2.xpose.msra.mxu0 0.0
    %412 = vmatprep.subr.mxu0 0.0
    %413 = vmatpush2.xpose.msra.mxu0 0.0
    %414 = vmatprep.subr.mxu0 0.0
    %415 = vmatpush2.xpose.msra.mxu0 0.0
    %416 = vmatprep.mubr.f32.mxu0 0.0
    %417 = vmatmul.mubr.f32.gmra.mxu0 %v348
    %v418 = vpop.f32.mrf.mxu0
    %v419 = vadd.f32 0.0, %v418
    %v420 = vpop.f32.mrf.mxu0
    %421 = vdwg.mxu0
    %422 = vrot.lane.b32.xlu0 %v174, 120
    %v423 = vpop.permute.xlu0 %422
    %424 = vrot.lane.b32.xlu0 %v184, 88
    %v425 = vpop.permute.xlu0 %424
    %v426 = vsel %vm190, %v423, 0
    %v428 = vsel %vm190, %v425, 0
    %430 = vmatprep.subr.mxu0 0.0
    %431 = vmatpush1.xpose.msra.mxu0 0.0
    %432 = vmatprep.subr.mxu0 0.0
    %433 = vmatpush1.xpose.msra.mxu0 0.0
    %434 = vmatprep.subr.mxu0 0.0
    %435 = vmatpush1.xpose.msra.mxu0 0.0
    %436 = vmatprep.subr.mxu0 0.0
    %437 = vmatpush1.xpose.msra.mxu0 0.0
    %438 = vmatprep.subr.mxu0 0.0
    %439 = vmatpush1.xpose.msra.mxu0 0.0
    %440 = vmatprep.subr.mxu0 0.0
    %441 = vmatpush1.xpose.msra.mxu0 0.0
    %442 = vmatprep.subr.mxu0 0.0
    %443 = vmatpush1.xpose.msra.mxu0 0.0
    %444 = vmatprep.subr.mxu0 0.0
    %445 = vmatpush1.xpose.msra.mxu0 0.0
    %446 = vmatprep.subr.mxu0 0.0
    %447 = vmatpush1.xpose.msra.mxu0 0.0
    %448 = vmatprep.subr.mxu0 0.0
    %449 = vmatpush1.xpose.msra.mxu0 0.0
    %450 = vmatprep.subr.mxu0 0.0
    %451 = vmatpush1.xpose.msra.mxu0 0.0
    %452 = vmatprep.subr.mxu0 0.0
    %453 = vmatpush1.xpose.msra.mxu0 0.0
    %454 = vmatprep.subr.mxu0 0.0
    %455 = vmatpush1.xpose.msra.mxu0 0.0
    %456 = vmatprep.subr.mxu0 0.0
    %457 = vmatpush1.xpose.msra.mxu0 0.0
    %458 = vmatprep.subr.mxu0 0.0
    %459 = vmatpush1.xpose.msra.mxu0 0.0
    %460 = vmatprep.subr.mxu0 0.0
    %461 = vmatpush1.xpose.msra.mxu0 %v428
    %462 = vmatprep.subr.mxu0 0.0
    %463 = vmatpush2.xpose.msra.mxu0 0.0
    %464 = vmatprep.subr.mxu0 0.0
    %465 = vmatpush2.xpose.msra.mxu0 0.0
    %466 = vmatprep.subr.mxu0 0.0
    %467 = vmatpush2.xpose.msra.mxu0 0.0
    %468 = vmatprep.subr.mxu0 0.0
    %469 = vmatpush2.xpose.msra.mxu0 0.0
    %470 = vmatprep.subr.mxu0 0.0
    %471 = vmatpush2.xpose.msra.mxu0 0.0
    %472 = vmatprep.subr.mxu0 0.0
    %473 = vmatpush2.xpose.msra.mxu0 0.0
    %474 = vmatprep.subr.mxu0 0.0
    %475 = vmatpush2.xpose.msra.mxu0 0.0
    %476 = vmatprep.subr.mxu0 0.0
    %477 = vmatpush2.xpose.msra.mxu0 0.0
    %478 = vmatprep.subr.mxu0 0.0
    %479 = vmatpush2.xpose.msra.mxu0 0.0
    %480 = vmatprep.subr.mxu0 0.0
    %481 = vmatpush2.xpose.msra.mxu0 0.0
    %482 = vmatprep.subr.mxu0 0.0
    %483 = vmatpush2.xpose.msra.mxu0 0.0
    %484 = vmatprep.subr.mxu0 0.0
    %485 = vmatpush2.xpose.msra.mxu0 0.0
    %486 = vmatprep.subr.mxu0 0.0
    %487 = vmatpush2.xpose.msra.mxu0 0.0
    %488 = vmatprep.subr.mxu0 0.0
    %489 = vmatpush2.xpose.msra.mxu0 0.0
    %490 = vmatprep.subr.mxu0 0.0
    %491 = vmatpush2.xpose.msra.mxu0 0.0
    %492 = vmatprep.subr.mxu0 0.0
    %493 = vmatpush2.xpose.msra.mxu0 0.0
    %494 = vmatprep.mubr.f32.mxu0 0.0
    %495 = vmatmul.mubr.f32.gmra.mxu0 %v426
    %v496 = vpop.f32.mrf.mxu0
    %v497 = vadd.f32 0.0, %v496
    %v498 = vpop.f32.mrf.mxu0
    %499 = vdwg.mxu0
    %500 = vrot.lane.b32.xlu0 %v169, 112
    %v501 = vpop.permute.xlu0 %500
    %502 = vrot.lane.b32.xlu0 %v179, 80
    %v503 = vpop.permute.xlu0 %502
    %v504 = vsel %vm190, %v501, 0
    %v506 = vsel %vm190, %v503, 0
    %508 = vmatprep.subr.mxu0 0.0
    %509 = vmatpush1.xpose.msra.mxu0 0.0
    %510 = vmatprep.subr.mxu0 0.0
    %511 = vmatpush1.xpose.msra.mxu0 0.0
    %512 = vmatprep.subr.mxu0 0.0
    %513 = vmatpush1.xpose.msra.mxu0 0.0
    %514 = vmatprep.subr.mxu0 0.0
    %515 = vmatpush1.xpose.msra.mxu0 0.0
    %516 = vmatprep.subr.mxu0 0.0
    %517 = vmatpush1.xpose.msra.mxu0 0.0
    %518 = vmatprep.subr.mxu0 0.0
    %519 = vmatpush1.xpose.msra.mxu0 0.0
    %520 = vmatprep.subr.mxu0 0.0
    %521 = vmatpush1.xpose.msra.mxu0 0.0
    %522 = vmatprep.subr.mxu0 0.0
    %523 = vmatpush1.xpose.msra.mxu0 0.0
    %524 = vmatprep.subr.mxu0 0.0
    %525 = vmatpush1.xpose.msra.mxu0 0.0
    %526 = vmatprep.subr.mxu0 0.0
    %527 = vmatpush1.xpose.msra.mxu0 0.0
    %528 = vmatprep.subr.mxu0 0.0
    %529 = vmatpush1.xpose.msra.mxu0 0.0
    %530 = vmatprep.subr.mxu0 0.0
    %531 = vmatpush1.xpose.msra.mxu0 0.0
    %532 = vmatprep.subr.mxu0 0.0
    %533 = vmatpush1.xpose.msra.mxu0 0.0
    %534 = vmatprep.subr.mxu0 0.0
    %535 = vmatpush1.xpose.msra.mxu0 0.0
    %536 = vmatprep.subr.mxu0 0.0
    %537 = vmatpush1.xpose.msra.mxu0 0.0
    %538 = vmatprep.subr.mxu0 0.0
    %539 = vmatpush1.xpose.msra.mxu0 %v506
    %540 = vmatprep.subr.mxu0 0.0
    %541 = vmatpush2.xpose.msra.mxu0 0.0
    %542 = vmatprep.subr.mxu0 0.0
    %543 = vmatpush2.xpose.msra.mxu0 0.0
    %544 = vmatprep.subr.mxu0 0.0
    %545 = vmatpush2.xpose.msra.mxu0 0.0
    %546 = vmatprep.subr.mxu0 0.0
    %547 = vmatpush2.xpose.msra.mxu0 0.0
    %548 = vmatprep.subr.mxu0 0.0
    %549 = vmatpush2.xpose.msra.mxu0 0.0
    %550 = vmatprep.subr.mxu0 0.0
    %551 = vmatpush2.xpose.msra.mxu0 0.0
    %552 = vmatprep.subr.mxu0 0.0
    %553 = vmatpush2.xpose.msra.mxu0 0.0
    %554 = vmatprep.subr.mxu0 0.0
    %555 = vmatpush2.xpose.msra.mxu0 0.0
    %556 = vmatprep.subr.mxu0 0.0
    %557 = vmatpush2.xpose.msra.mxu0 0.0
    %558 = vmatprep.subr.mxu0 0.0
    %559 = vmatpush2.xpose.msra.mxu0 0.0
    %560 = vmatprep.subr.mxu0 0.0
    %561 = vmatpush2.xpose.msra.mxu0 0.0
    %562 = vmatprep.subr.mxu0 0.0
    %563 = vmatpush2.xpose.msra.mxu0 0.0
    %564 = vmatprep.subr.mxu0 0.0
    %565 = vmatpush2.xpose.msra.mxu0 0.0
    %566 = vmatprep.subr.mxu0 0.0
    %567 = vmatpush2.xpose.msra.mxu0 0.0
    %568 = vmatprep.subr.mxu0 0.0
    %569 = vmatpush2.xpose.msra.mxu0 0.0
    %570 = vmatprep.subr.mxu0 0.0
    %571 = vmatpush2.xpose.msra.mxu0 0.0
    %572 = vmatprep.mubr.f32.mxu0 0.0
    %573 = vmatmul.mubr.f32.gmra.mxu0 %v504
    %v574 = vpop.f32.mrf.mxu0
    %v575 = vadd.f32 0.0, %v574
    %v576 = vpop.f32.mrf.mxu0
    %577 = vdwg.mxu0
    %578 = vrot.lane.b32.xlu0 %v174, 112
    %v579 = vpop.permute.xlu0 %578
    %580 = vrot.lane.b32.xlu0 %v184, 80
    %v581 = vpop.permute.xlu0 %580
    %v582 = vsel %vm190, %v579, 0
    %v584 = vsel %vm190, %v581, 0
    %586 = vmatprep.subr.mxu0 0.0
    %587 = vmatpush1.xpose.msra.mxu0 0.0
    %588 = vmatprep.subr.mxu0 0.0
    %589 = vmatpush1.xpose.msra.mxu0 0.0
    %590 = vmatprep.subr.mxu0 0.0
    %591 = vmatpush1.xpose.msra.mxu0 0.0
    %592 = vmatprep.subr.mxu0 0.0
    %593 = vmatpush1.xpose.msra.mxu0 0.0
    %594 = vmatprep.subr.mxu0 0.0
    %595 = vmatpush1.xpose.msra.mxu0 0.0
    %596 = vmatprep.subr.mxu0 0.0
    %597 = vmatpush1.xpose.msra.mxu0 0.0
    %598 = vmatprep.subr.mxu0 0.0
    %599 = vmatpush1.xpose.msra.mxu0 0.0
    %600 = vmatprep.subr.mxu0 0.0
    %601 = vmatpush1.xpose.msra.mxu0 0.0
    %602 = vmatprep.subr.mxu0 0.0
    %603 = vmatpush1.xpose.msra.mxu0 0.0
    %604 = vmatprep.subr.mxu0 0.0
    %605 = vmatpush1.xpose.msra.mxu0 0.0
    %606 = vmatprep.subr.mxu0 0.0
    %607 = vmatpush1.xpose.msra.mxu0 0.0
    %608 = vmatprep.subr.mxu0 0.0
    %609 = vmatpush1.xpose.msra.mxu0 0.0
    %610 = vmatprep.subr.mxu0 0.0
    %611 = vmatpush1.xpose.msra.mxu0 0.0
    %612 = vmatprep.subr.mxu0 0.0
    %613 = vmatpush1.xpose.msra.mxu0 0.0
    %614 = vmatprep.subr.mxu0 0.0
    %615 = vmatpush1.xpose.msra.mxu0 0.0
    %616 = vmatprep.subr.mxu0 0.0
    %617 = vmatpush1.xpose.msra.mxu0 %v584
    %618 = vmatprep.subr.mxu0 0.0
    %619 = vmatpush2.xpose.msra.mxu0 0.0
    %620 = vmatprep.subr.mxu0 0.0
    %621 = vmatpush2.xpose.msra.mxu0 0.0
    %622 = vmatprep.subr.mxu0 0.0
    %623 = vmatpush2.xpose.msra.mxu0 0.0
    %624 = vmatprep.subr.mxu0 0.0
    %625 = vmatpush2.xpose.msra.mxu0 0.0
    %626 = vmatprep.subr.mxu0 0.0
    %627 = vmatpush2.xpose.msra.mxu0 0.0
    %628 = vmatprep.subr.mxu0 0.0
    %629 = vmatpush2.xpose.msra.mxu0 0.0
    %630 = vmatprep.subr.mxu0 0.0
    %631 = vmatpush2.xpose.msra.mxu0 0.0
    %632 = vmatprep.subr.mxu0 0.0
    %633 = vmatpush2.xpose.msra.mxu0 0.0
    %634 = vmatprep.subr.mxu0 0.0
    %635 = vmatpush2.xpose.msra.mxu0 0.0
    %636 = vmatprep.subr.mxu0 0.0
    %637 = vmatpush2.xpose.msra.mxu0 0.0
    %638 = vmatprep.subr.mxu0 0.0
    %639 = vmatpush2.xpose.msra.mxu0 0.0
    %640 = vmatprep.subr.mxu0 0.0
    %641 = vmatpush2.xpose.msra.mxu0 0.0
    %642 = vmatprep.subr.mxu0 0.0
    %643 = vmatpush2.xpose.msra.mxu0 0.0
    %644 = vmatprep.subr.mxu0 0.0
    %645 = vmatpush2.xpose.msra.mxu0 0.0
    %646 = vmatprep.subr.mxu0 0.0
    %647 = vmatpush2.xpose.msra.mxu0 0.0
    %648 = vmatprep.subr.mxu0 0.0
    %649 = vmatpush2.xpose.msra.mxu0 0.0
    %650 = vmatprep.mubr.f32.mxu0 0.0
    %651 = vmatmul.mubr.f32.gmra.mxu0 %v582
    %v652 = vpop.f32.mrf.mxu0
    %v653 = vadd.f32 0.0, %v652
    %v654 = vpop.f32.mrf.mxu0
    %655 = vdwg.mxu0
    %656 = vrot.lane.b32.xlu0 %v169, 104
    %v657 = vpop.permute.xlu0 %656
    %658 = vrot.lane.b32.xlu0 %v179, 72
    %v659 = vpop.permute.xlu0 %658
    %v660 = vsel %vm190, %v657, 0
    %v662 = vsel %vm190, %v659, 0
    %664 = vmatprep.subr.mxu0 0.0
    %665 = vmatpush1.xpose.msra.mxu0 0.0
    %666 = vmatprep.subr.mxu0 0.0
    %667 = vmatpush1.xpose.msra.mxu0 0.0
    %668 = vmatprep.subr.mxu0 0.0
    %669 = vmatpush1.xpose.msra.mxu0 0.0
    %670 = vmatprep.subr.mxu0 0.0
    %671 = vmatpush1.xpose.msra.mxu0 0.0
    %672 = vmatprep.subr.mxu0 0.0
    %673 = vmatpush1.xpose.msra.mxu0 0.0
    %674 = vmatprep.subr.mxu0 0.0
    %675 = vmatpush1.xpose.msra.mxu0 0.0
    %676 = vmatprep.subr.mxu0 0.0
    %677 = vmatpush1.xpose.msra.mxu0 0.0
    %678 = vmatprep.subr.mxu0 0.0
    %679 = vmatpush1.xpose.msra.mxu0 0.0
    %680 = vmatprep.subr.mxu0 0.0
    %681 = vmatpush1.xpose.msra.mxu0 0.0
    %682 = vmatprep.subr.mxu0 0.0
    %683 = vmatpush1.xpose.msra.mxu0 0.0
    %684 = vmatprep.subr.mxu0 0.0
    %685 = vmatpush1.xpose.msra.mxu0 0.0
    %686 = vmatprep.subr.mxu0 0.0
    %687 = vmatpush1.xpose.msra.mxu0 0.0
    %688 = vmatprep.subr.mxu0 0.0
    %689 = vmatpush1.xpose.msra.mxu0 0.0
    %690 = vmatprep.subr.mxu0 0.0
    %691 = vmatpush1.xpose.msra.mxu0 0.0
    %692 = vmatprep.subr.mxu0 0.0
    %693 = vmatpush1.xpose.msra.mxu0 0.0
    %694 = vmatprep.subr.mxu0 0.0
    %695 = vmatpush1.xpose.msra.mxu0 %v662
    %696 = vmatprep.subr.mxu0 0.0
    %697 = vmatpush2.xpose.msra.mxu0 0.0
    %698 = vmatprep.subr.mxu0 0.0
    %699 = vmatpush2.xpose.msra.mxu0 0.0
    %700 = vmatprep.subr.mxu0 0.0
    %701 = vmatpush2.xpose.msra.mxu0 0.0
    %702 = vmatprep.subr.mxu0 0.0
    %703 = vmatpush2.xpose.msra.mxu0 0.0
    %704 = vmatprep.subr.mxu0 0.0
    %705 = vmatpush2.xpose.msra.mxu0 0.0
    %706 = vmatprep.subr.mxu0 0.0
    %707 = vmatpush2.xpose.msra.mxu0 0.0
    %708 = vmatprep.subr.mxu0 0.0
    %709 = vmatpush2.xpose.msra.mxu0 0.0
    %710 = vmatprep.subr.mxu0 0.0
    %711 = vmatpush2.xpose.msra.mxu0 0.0
    %712 = vmatprep.subr.mxu0 0.0
    %713 = vmatpush2.xpose.msra.mxu0 0.0
    %714 = vmatprep.subr.mxu0 0.0
    %715 = vmatpush2.xpose.msra.mxu0 0.0
    %716 = vmatprep.subr.mxu0 0.0
    %717 = vmatpush2.xpose.msra.mxu0 0.0
    %718 = vmatprep.subr.mxu0 0.0
    %719 = vmatpush2.xpose.msra.mxu0 0.0
    %720 = vmatprep.subr.mxu0 0.0
    %721 = vmatpush2.xpose.msra.mxu0 0.0
    %722 = vmatprep.subr.mxu0 0.0
    %723 = vmatpush2.xpose.msra.mxu0 0.0
    %724 = vmatprep.subr.mxu0 0.0
    %725 = vmatpush2.xpose.msra.mxu0 0.0
    %726 = vmatprep.subr.mxu0 0.0
    %727 = vmatpush2.xpose.msra.mxu0 0.0
    %728 = vmatprep.mubr.f32.mxu0 0.0
    %729 = vmatmul.mubr.f32.gmra.mxu0 %v660
    %v730 = vpop.f32.mrf.mxu0
    %v731 = vadd.f32 0.0, %v730
    %v732 = vpop.f32.mrf.mxu0
    %733 = vdwg.mxu0
    %734 = vrot.lane.b32.xlu0 %v174, 104
    %v735 = vpop.permute.xlu0 %734
    %736 = vrot.lane.b32.xlu0 %v184, 72
    %v737 = vpop.permute.xlu0 %736
    %v738 = vsel %vm190, %v735, 0
    %v740 = vsel %vm190, %v737, 0
    %742 = vmatprep.subr.mxu0 0.0
    %743 = vmatpush1.xpose.msra.mxu0 0.0
    %744 = vmatprep.subr.mxu0 0.0
    %745 = vmatpush1.xpose.msra.mxu0 0.0
    %746 = vmatprep.subr.mxu0 0.0
    %747 = vmatpush1.xpose.msra.mxu0 0.0
    %748 = vmatprep.subr.mxu0 0.0
    %749 = vmatpush1.xpose.msra.mxu0 0.0
    %750 = vmatprep.subr.mxu0 0.0
    %751 = vmatpush1.xpose.msra.mxu0 0.0
    %752 = vmatprep.subr.mxu0 0.0
    %753 = vmatpush1.xpose.msra.mxu0 0.0
    %754 = vmatprep.subr.mxu0 0.0
    %755 = vmatpush1.xpose.msra.mxu0 0.0
    %756 = vmatprep.subr.mxu0 0.0
    %757 = vmatpush1.xpose.msra.mxu0 0.0
    %758 = vmatprep.subr.mxu0 0.0
    %759 = vmatpush1.xpose.msra.mxu0 0.0
    %760 = vmatprep.subr.mxu0 0.0
    %761 = vmatpush1.xpose.msra.mxu0 0.0
    %762 = vmatprep.subr.mxu0 0.0
    %763 = vmatpush1.xpose.msra.mxu0 0.0
    %764 = vmatprep.subr.mxu0 0.0
    %765 = vmatpush1.xpose.msra.mxu0 0.0
    %766 = vmatprep.subr.mxu0 0.0
    %767 = vmatpush1.xpose.msra.mxu0 0.0
    %768 = vmatprep.subr.mxu0 0.0
    %769 = vmatpush1.xpose.msra.mxu0 0.0
    %770 = vmatprep.subr.mxu0 0.0
    %771 = vmatpush1.xpose.msra.mxu0 0.0
    %772 = vmatprep.subr.mxu0 0.0
    %773 = vmatpush1.xpose.msra.mxu0 %v740
    %774 = vmatprep.subr.mxu0 0.0
    %775 = vmatpush2.xpose.msra.mxu0 0.0
    %776 = vmatprep.subr.mxu0 0.0
    %777 = vmatpush2.xpose.msra.mxu0 0.0
    %778 = vmatprep.subr.mxu0 0.0
    %779 = vmatpush2.xpose.msra.mxu0 0.0
    %780 = vmatprep.subr.mxu0 0.0
    %781 = vmatpush2.xpose.msra.mxu0 0.0
    %782 = vmatprep.subr.mxu0 0.0
    %783 = vmatpush2.xpose.msra.mxu0 0.0
    %784 = vmatprep.subr.mxu0 0.0
    %785 = vmatpush2.xpose.msra.mxu0 0.0
    %786 = vmatprep.subr.mxu0 0.0
    %787 = vmatpush2.xpose.msra.mxu0 0.0
    %788 = vmatprep.subr.mxu0 0.0
    %789 = vmatpush2.xpose.msra.mxu0 0.0
    %790 = vmatprep.subr.mxu0 0.0
    %791 = vmatpush2.xpose.msra.mxu0 0.0
    %792 = vmatprep.subr.mxu0 0.0
    %793 = vmatpush2.xpose.msra.mxu0 0.0
    %794 = vmatprep.subr.mxu0 0.0
    %795 = vmatpush2.xpose.msra.mxu0 0.0
    %796 = vmatprep.subr.mxu0 0.0
    %797 = vmatpush2.xpose.msra.mxu0 0.0
    %798 = vmatprep.subr.mxu0 0.0
    %799 = vmatpush2.xpose.msra.mxu0 0.0
    %800 = vmatprep.subr.mxu0 0.0
    %801 = vmatpush2.xpose.msra.mxu0 0.0
    %802 = vmatprep.subr.mxu0 0.0
    %803 = vmatpush2.xpose.msra.mxu0 0.0
    %804 = vmatprep.subr.mxu0 0.0
    %805 = vmatpush2.xpose.msra.mxu0 0.0
    %806 = vmatprep.mubr.f32.mxu0 0.0
    %807 = vmatmul.mubr.f32.gmra.mxu0 %v738
    %v808 = vpop.f32.mrf.mxu0
    %v809 = vadd.f32 0.0, %v808
    %v810 = vpop.f32.mrf.mxu0
    %811 = vdwg.mxu0
    %v812 = vsel %vm190, %v263, -inf
    %813 = vmax.xlane.f32.xlu0 %v812
    %v814 = vpop.xlane.xlu0 %813
    %v815 = vsel %vm190, %v341, -inf
    %816 = vmax.xlane.f32.xlu0 %v815
    %v817 = vpop.xlane.xlu0 %816
    %v818 = vsel %vm190, %v419, -inf
    %819 = vmax.xlane.f32.xlu0 %v818
    %v820 = vpop.xlane.xlu0 %819
    %v821 = vsel %vm190, %v497, -inf
    %822 = vmax.xlane.f32.xlu0 %v821
    %v823 = vpop.xlane.xlu0 %822
    %v824 = vsel %vm190, %v575, -inf
    %825 = vmax.xlane.f32.xlu0 %v824
    %v826 = vpop.xlane.xlu0 %825
    %v827 = vsel %vm190, %v653, -inf
    %828 = vmax.xlane.f32.xlu0 %v827
    %v829 = vpop.xlane.xlu0 %828
    %v830 = vsel %vm190, %v731, -inf
    %831 = vmax.xlane.f32.xlu0 %v830
    %v832 = vpop.xlane.xlu0 %831
    %v833 = vsel %vm190, %v809, -inf
    %834 = vmax.xlane.f32.xlu0 %v833
    %v835 = vpop.xlane.xlu0 %834
    %v836 = vsub.f32 %v263, %v814
    %v837 = vsub.f32 %v341, %v817
    %v838 = vsub.f32 %v419, %v820
    %v839 = vsub.f32 %v497, %v823
    %v840 = vsub.f32 %v575, %v826
    %v841 = vsub.f32 %v653, %v829
    %v842 = vsub.f32 %v731, %v832
    %v843 = vsub.f32 %v809, %v835
    %v844 = vmul.f32 %v836, 1.442695
    %v845 = vpow.pop %v844
    %v846 = vmul.f32 %v837, 1.442695
    %v847 = vpow.pop %v846
    %v848 = vmul.f32 %v838, 1.442695
    %v849 = vpow.pop %v848
    %v850 = vmul.f32 %v839, 1.442695
    %v851 = vpow.pop %v850
    %v852 = vmul.f32 %v840, 1.442695
    %v853 = vpow.pop %v852
    %v854 = vmul.f32 %v841, 1.442695
    %v855 = vpow.pop %v854
    %v856 = vmul.f32 %v842, 1.442695
    %v857 = vpow.pop %v856
    %v858 = vmul.f32 %v843, 1.442695
    %v859 = vpow.pop %v858
    %v860 = vsel %vm190, %v845, 0.0
    %861 = vadd.xlane.f32.xlu0 %v860
    %v862 = vpop.xlane.xlu0 %861
    %v863 = vsel %vm190, %v847, 0.0
    %864 = vadd.xlane.f32.xlu0 %v863
    %v865 = vpop.xlane.xlu0 %864
    %v866 = vsel %vm190, %v849, 0.0
    %867 = vadd.xlane.f32.xlu0 %v866
    %v868 = vpop.xlane.xlu0 %867
    %v869 = vsel %vm190, %v851, 0.0
    %870 = vadd.xlane.f32.xlu0 %v869
    %v871 = vpop.xlane.xlu0 %870
    %v872 = vsel %vm190, %v853, 0.0
    %873 = vadd.xlane.f32.xlu0 %v872
    %v874 = vpop.xlane.xlu0 %873
    %v875 = vsel %vm190, %v855, 0.0
    %876 = vadd.xlane.f32.xlu0 %v875
    %v877 = vpop.xlane.xlu0 %876
    %v878 = vsel %vm190, %v857, 0.0
    %879 = vadd.xlane.f32.xlu0 %v878
    %v880 = vpop.xlane.xlu0 %879
    %v881 = vsel %vm190, %v859, 0.0
    %882 = vadd.xlane.f32.xlu0 %v881
    %v883 = vpop.xlane.xlu0 %882
    %v884 = vrcp.pop %v862
    %v885 = vmul.f32 %v845, %v884
    %v886 = vrcp.pop %v865
    %v887 = vmul.f32 %v847, %v886
    %v888 = vrcp.pop %v868
    %v889 = vmul.f32 %v849, %v888
    %v890 = vrcp.pop %v871
    %v891 = vmul.f32 %v851, %v890
    %v892 = vrcp.pop %v874
    %v893 = vmul.f32 %v853, %v892
    %v894 = vrcp.pop %v877
    %v895 = vmul.f32 %v855, %v894
    %v896 = vrcp.pop %v880
    %v897 = vmul.f32 %v857, %v896
    %v898 = vrcp.pop %v883
    %v899 = vmul.f32 %v859, %v898
    %900 = vrot.lane.b32.xlu0 %v179, 64
    %v901 = vpop.permute.xlu0 %900
    %v904 = vsel %vm190, %v885, 0
    %906 = vmatprep.subr.mxu0 0.0
    %907 = vmatpush1.msra.mxu0 0.0
    %908 = vmatprep.subr.mxu0 0.0
    %909 = vmatpush1.msra.mxu0 0.0
    %910 = vmatprep.subr.mxu0 0.0
    %911 = vmatpush1.msra.mxu0 0.0
    %912 = vmatprep.subr.mxu0 0.0
    %913 = vmatpush1.msra.mxu0 0.0
    %914 = vmatprep.subr.mxu0 0.0
    %915 = vmatpush1.msra.mxu0 0.0
    %916 = vmatprep.subr.mxu0 0.0
    %917 = vmatpush1.msra.mxu0 0.0
    %918 = vmatprep.subr.mxu0 0.0
    %919 = vmatpush1.msra.mxu0 0.0
    %920 = vmatprep.subr.mxu0 0.0
    %921 = vmatpush1.msra.mxu0 0.0
    %922 = vmatprep.subr.mxu0 0.0
    %923 = vmatpush1.msra.mxu0 0.0
    %924 = vmatprep.subr.mxu0 0.0
    %925 = vmatpush1.msra.mxu0 0.0
    %926 = vmatprep.subr.mxu0 0.0
    %927 = vmatpush1.msra.mxu0 0.0
    %928 = vmatprep.subr.mxu0 0.0
    %929 = vmatpush1.msra.mxu0 0.0
    %930 = vmatprep.subr.mxu0 0.0
    %931 = vmatpush1.msra.mxu0 0.0
    %932 = vmatprep.subr.mxu0 0.0
    %933 = vmatpush1.msra.mxu0 0.0
    %934 = vmatprep.subr.mxu0 0.0
    %935 = vmatpush1.msra.mxu0 0.0
    %936 = vmatprep.subr.mxu0 0.0
    %937 = vmatpush1.msra.mxu0 %v901
    %938 = vmatprep.subr.mxu0 0.0
    %939 = vmatpush2.msra.mxu0 0.0
    %940 = vmatprep.subr.mxu0 0.0
    %941 = vmatpush2.msra.mxu0 0.0
    %942 = vmatprep.subr.mxu0 0.0
    %943 = vmatpush2.msra.mxu0 0.0
    %944 = vmatprep.subr.mxu0 0.0
    %945 = vmatpush2.msra.mxu0 0.0
    %946 = vmatprep.subr.mxu0 0.0
    %947 = vmatpush2.msra.mxu0 0.0
    %948 = vmatprep.subr.mxu0 0.0
    %949 = vmatpush2.msra.mxu0 0.0
    %950 = vmatprep.subr.mxu0 0.0
    %951 = vmatpush2.msra.mxu0 0.0
    %952 = vmatprep.subr.mxu0 0.0
    %953 = vmatpush2.msra.mxu0 0.0
    %954 = vmatprep.subr.mxu0 0.0
    %955 = vmatpush2.msra.mxu0 0.0
    %956 = vmatprep.subr.mxu0 0.0
    %957 = vmatpush2.msra.mxu0 0.0
    %958 = vmatprep.subr.mxu0 0.0
    %959 = vmatpush2.msra.mxu0 0.0
    %960 = vmatprep.subr.mxu0 0.0
    %961 = vmatpush2.msra.mxu0 0.0
    %962 = vmatprep.subr.mxu0 0.0
    %963 = vmatpush2.msra.mxu0 0.0
    %964 = vmatprep.subr.mxu0 0.0
    %965 = vmatpush2.msra.mxu0 0.0
    %966 = vmatprep.subr.mxu0 0.0
    %967 = vmatpush2.msra.mxu0 0.0
    %968 = vmatprep.subr.mxu0 0.0
    %969 = vmatpush2.msra.mxu0 0.0
    %970 = vmatprep.mubr.f32.mxu0 0.0
    %971 = vmatmul.mubr.f32.gmra.mxu0 %v904
    %v972 = vpop.f32.mrf.mxu0
    %v973 = vadd.f32 0.0, %v972
    %v974 = vpop.f32.mrf.mxu0
    %975 = vdwg.mxu0
    %976 = vrot.lane.b32.xlu0 %v184, 64
    %v977 = vpop.permute.xlu0 %976
    %v980 = vsel %vm190, %v887, 0
    %982 = vmatprep.subr.mxu0 0.0
    %983 = vmatpush1.msra.mxu0 0.0
    %984 = vmatprep.subr.mxu0 0.0
    %985 = vmatpush1.msra.mxu0 0.0
    %986 = vmatprep.subr.mxu0 0.0
    %987 = vmatpush1.msra.mxu0 0.0
    %988 = vmatprep.subr.mxu0 0.0
    %989 = vmatpush1.msra.mxu0 0.0
    %990 = vmatprep.subr.mxu0 0.0
    %991 = vmatpush1.msra.mxu0 0.0
    %992 = vmatprep.subr.mxu0 0.0
    %993 = vmatpush1.msra.mxu0 0.0
    %994 = vmatprep.subr.mxu0 0.0
    %995 = vmatpush1.msra.mxu0 0.0
    %996 = vmatprep.subr.mxu0 0.0
    %997 = vmatpush1.msra.mxu0 0.0
    %998 = vmatprep.subr.mxu0 0.0
    %999 = vmatpush1.msra.mxu0 0.0
    %1000 = vmatprep.subr.mxu0 0.0
    %1001 = vmatpush1.msra.mxu0 0.0
    %1002 = vmatprep.subr.mxu0 0.0
    %1003 = vmatpush1.msra.mxu0 0.0
    %1004 = vmatprep.subr.mxu0 0.0
    %1005 = vmatpush1.msra.mxu0 0.0
    %1006 = vmatprep.subr.mxu0 0.0
    %1007 = vmatpush1.msra.mxu0 0.0
    %1008 = vmatprep.subr.mxu0 0.0
    %1009 = vmatpush1.msra.mxu0 0.0
    %1010 = vmatprep.subr.mxu0 0.0
    %1011 = vmatpush1.msra.mxu0 0.0
    %1012 = vmatprep.subr.mxu0 0.0
    %1013 = vmatpush1.msra.mxu0 %v977
    %1014 = vmatprep.subr.mxu0 0.0
    %1015 = vmatpush2.msra.mxu0 0.0
    %1016 = vmatprep.subr.mxu0 0.0
    %1017 = vmatpush2.msra.mxu0 0.0
    %1018 = vmatprep.subr.mxu0 0.0
    %1019 = vmatpush2.msra.mxu0 0.0
    %1020 = vmatprep.subr.mxu0 0.0
    %1021 = vmatpush2.msra.mxu0 0.0
    %1022 = vmatprep.subr.mxu0 0.0
    %1023 = vmatpush2.msra.mxu0 0.0
    %1024 = vmatprep.subr.mxu0 0.0
    %1025 = vmatpush2.msra.mxu0 0.0
    %1026 = vmatprep.subr.mxu0 0.0
    %1027 = vmatpush2.msra.mxu0 0.0
    %1028 = vmatprep.subr.mxu0 0.0
    %1029 = vmatpush2.msra.mxu0 0.0
    %1030 = vmatprep.subr.mxu0 0.0
    %1031 = vmatpush2.msra.mxu0 0.0
    %1032 = vmatprep.subr.mxu0 0.0
    %1033 = vmatpush2.msra.mxu0 0.0
    %1034 = vmatprep.subr.mxu0 0.0
    %1035 = vmatpush2.msra.mxu0 0.0
    %1036 = vmatprep.subr.mxu0 0.0
    %1037 = vmatpush2.msra.mxu0 0.0
    %1038 = vmatprep.subr.mxu0 0.0
    %1039 = vmatpush2.msra.mxu0 0.0
    %1040 = vmatprep.subr.mxu0 0.0
    %1041 = vmatpush2.msra.mxu0 0.0
    %1042 = vmatprep.subr.mxu0 0.0
    %1043 = vmatpush2.msra.mxu0 0.0
    %1044 = vmatprep.subr.mxu0 0.0
    %1045 = vmatpush2.msra.mxu0 0.0
    %1046 = vmatprep.mubr.f32.mxu0 0.0
    %1047 = vmatmul.mubr.f32.gmra.mxu0 %v980
    %v1048 = vpop.f32.mrf.mxu0
    %v1049 = vadd.f32 0.0, %v1048
    %v1050 = vpop.f32.mrf.mxu0
    %1051 = vdwg.mxu0
    %1052 = vrot.lane.b32.xlu0 %v179, 56
    %v1053 = vpop.permute.xlu0 %1052
    %v1056 = vsel %vm190, %v889, 0
    %1058 = vmatprep.subr.mxu0 0.0
    %1059 = vmatpush1.msra.mxu0 0.0
    %1060 = vmatprep.subr.mxu0 0.0
    %1061 = vmatpush1.msra.mxu0 0.0
    %1062 = vmatprep.subr.mxu0 0.0
    %1063 = vmatpush1.msra.mxu0 0.0
    %1064 = vmatprep.subr.mxu0 0.0
    %1065 = vmatpush1.msra.mxu0 0.0
    %1066 = vmatprep.subr.mxu0 0.0
    %1067 = vmatpush1.msra.mxu0 0.0
    %1068 = vmatprep.subr.mxu0 0.0
    %1069 = vmatpush1.msra.mxu0 0.0
    %1070 = vmatprep.subr.mxu0 0.0
    %1071 = vmatpush1.msra.mxu0 0.0
    %1072 = vmatprep.subr.mxu0 0.0
    %1073 = vmatpush1.msra.mxu0 0.0
    %1074 = vmatprep.subr.mxu0 0.0
    %1075 = vmatpush1.msra.mxu0 0.0
    %1076 = vmatprep.subr.mxu0 0.0
    %1077 = vmatpush1.msra.mxu0 0.0
    %1078 = vmatprep.subr.mxu0 0.0
    %1079 = vmatpush1.msra.mxu0 0.0
    %1080 = vmatprep.subr.mxu0 0.0
    %1081 = vmatpush1.msra.mxu0 0.0
    %1082 = vmatprep.subr.mxu0 0.0
    %1083 = vmatpush1.msra.mxu0 0.0
    %1084 = vmatprep.subr.mxu0 0.0
    %1085 = vmatpush1.msra.mxu0 0.0
    %1086 = vmatprep.subr.mxu0 0.0
    %1087 = vmatpush1.msra.mxu0 0.0
    %1088 = vmatprep.subr.mxu0 0.0
    %1089 = vmatpush1.msra.mxu0 %v1053
    %1090 = vmatprep.subr.mxu0 0.0
    %1091 = vmatpush2.msra.mxu0 0.0
    %1092 = vmatprep.subr.mxu0 0.0
    %1093 = vmatpush2.msra.mxu0 0.0
    %1094 = vmatprep.subr.mxu0 0.0
    %1095 = vmatpush2.msra.mxu0 0.0
    %1096 = vmatprep.subr.mxu0 0.0
    %1097 = vmatpush2.msra.mxu0 0.0
    %1098 = vmatprep.subr.mxu0 0.0
    %1099 = vmatpush2.msra.mxu0 0.0
    %1100 = vmatprep.subr.mxu0 0.0
    %1101 = vmatpush2.msra.mxu0 0.0
    %1102 = vmatprep.subr.mxu0 0.0
    %1103 = vmatpush2.msra.mxu0 0.0
    %1104 = vmatprep.subr.mxu0 0.0
    %1105 = vmatpush2.msra.mxu0 0.0
    %1106 = vmatprep.subr.mxu0 0.0
    %1107 = vmatpush2.msra.mxu0 0.0
    %1108 = vmatprep.subr.mxu0 0.0
    %1109 = vmatpush2.msra.mxu0 0.0
    %1110 = vmatprep.subr.mxu0 0.0
    %1111 = vmatpush2.msra.mxu0 0.0
    %1112 = vmatprep.subr.mxu0 0.0
    %1113 = vmatpush2.msra.mxu0 0.0
    %1114 = vmatprep.subr.mxu0 0.0
    %1115 = vmatpush2.msra.mxu0 0.0
    %1116 = vmatprep.subr.mxu0 0.0
    %1117 = vmatpush2.msra.mxu0 0.0
    %1118 = vmatprep.subr.mxu0 0.0
    %1119 = vmatpush2.msra.mxu0 0.0
    %1120 = vmatprep.subr.mxu0 0.0
    %1121 = vmatpush2.msra.mxu0 0.0
    %1122 = vmatprep.mubr.f32.mxu0 0.0
    %1123 = vmatmul.mubr.f32.gmra.mxu0 %v1056
    %v1124 = vpop.f32.mrf.mxu0
    %v1125 = vadd.f32 0.0, %v1124
    %v1126 = vpop.f32.mrf.mxu0
    %1127 = vdwg.mxu0
    %1128 = vrot.lane.b32.xlu0 %v184, 56
    %v1129 = vpop.permute.xlu0 %1128
    %v1132 = vsel %vm190, %v891, 0
    %1134 = vmatprep.subr.mxu0 0.0
    %1135 = vmatpush1.msra.mxu0 0.0
    %1136 = vmatprep.subr.mxu0 0.0
    %1137 = vmatpush1.msra.mxu0 0.0
    %1138 = vmatprep.subr.mxu0 0.0
    %1139 = vmatpush1.msra.mxu0 0.0
    %1140 = vmatprep.subr.mxu0 0.0
    %1141 = vmatpush1.msra.mxu0 0.0
    %1142 = vmatprep.subr.mxu0 0.0
    %1143 = vmatpush1.msra.mxu0 0.0
    %1144 = vmatprep.subr.mxu0 0.0
    %1145 = vmatpush1.msra.mxu0 0.0
    %1146 = vmatprep.subr.mxu0 0.0
    %1147 = vmatpush1.msra.mxu0 0.0
    %1148 = vmatprep.subr.mxu0 0.0
    %1149 = vmatpush1.msra.mxu0 0.0
    %1150 = vmatprep.subr.mxu0 0.0
    %1151 = vmatpush1.msra.mxu0 0.0
    %1152 = vmatprep.subr.mxu0 0.0
    %1153 = vmatpush1.msra.mxu0 0.0
    %1154 = vmatprep.subr.mxu0 0.0
    %1155 = vmatpush1.msra.mxu0 0.0
    %1156 = vmatprep.subr.mxu0 0.0
    %1157 = vmatpush1.msra.mxu0 0.0
    %1158 = vmatprep.subr.mxu0 0.0
    %1159 = vmatpush1.msra.mxu0 0.0
    %1160 = vmatprep.subr.mxu0 0.0
    %1161 = vmatpush1.msra.mxu0 0.0
    %1162 = vmatprep.subr.mxu0 0.0
    %1163 = vmatpush1.msra.mxu0 0.0
    %1164 = vmatprep.subr.mxu0 0.0
    %1165 = vmatpush1.msra.mxu0 %v1129
    %1166 = vmatprep.subr.mxu0 0.0
    %1167 = vmatpush2.msra.mxu0 0.0
    %1168 = vmatprep.subr.mxu0 0.0
    %1169 = vmatpush2.msra.mxu0 0.0
    %1170 = vmatprep.subr.mxu0 0.0
    %1171 = vmatpush2.msra.mxu0 0.0
    %1172 = vmatprep.subr.mxu0 0.0
    %1173 = vmatpush2.msra.mxu0 0.0
    %1174 = vmatprep.subr.mxu0 0.0
    %1175 = vmatpush2.msra.mxu0 0.0
    %1176 = vmatprep.subr.mxu0 0.0
    %1177 = vmatpush2.msra.mxu0 0.0
    %1178 = vmatprep.subr.mxu0 0.0
    %1179 = vmatpush2.msra.mxu0 0.0
    %1180 = vmatprep.subr.mxu0 0.0
    %1181 = vmatpush2.msra.mxu0 0.0
    %1182 = vmatprep.subr.mxu0 0.0
    %1183 = vmatpush2.msra.mxu0 0.0
    %1184 = vmatprep.subr.mxu0 0.0
    %1185 = vmatpush2.msra.mxu0 0.0
    %1186 = vmatprep.subr.mxu0 0.0
    %1187 = vmatpush2.msra.mxu0 0.0
    %1188 = vmatprep.subr.mxu0 0.0
    %1189 = vmatpush2.msra.mxu0 0.0
    %1190 = vmatprep.subr.mxu0 0.0
    %1191 = vmatpush2.msra.mxu0 0.0
    %1192 = vmatprep.subr.mxu0 0.0
    %1193 = vmatpush2.msra.mxu0 0.0
    %1194 = vmatprep.subr.mxu0 0.0
    %1195 = vmatpush2.msra.mxu0 0.0
    %1196 = vmatprep.subr.mxu0 0.0
    %1197 = vmatpush2.msra.mxu0 0.0
    %1198 = vmatprep.mubr.f32.mxu0 0.0
    %1199 = vmatmul.mubr.f32.gmra.mxu0 %v1132
    %v1200 = vpop.f32.mrf.mxu0
    %v1201 = vadd.f32 0.0, %v1200
    %v1202 = vpop.f32.mrf.mxu0
    %1203 = vdwg.mxu0
    %v1205 = vsel %vm190, %v1125, 0
    %v1208 = vsel %vm190, %v1201, 0
    %1210 = vmatprep.subr.mxu0 0.0
    %1211 = vmatpush1.msra.mxu0 0.0
    %1212 = vmatprep.subr.mxu0 0.0
    %1213 = vmatpush1.msra.mxu0 0.0
    %1214 = vmatprep.subr.mxu0 0.0
    %1215 = vmatpush1.msra.mxu0 0.0
    %1216 = vmatprep.subr.mxu0 0.0
    %1217 = vmatpush1.msra.mxu0 0.0
    %1218 = vmatprep.subr.mxu0 0.0
    %1219 = vmatpush1.msra.mxu0 0.0
    %1220 = vmatprep.subr.mxu0 0.0
    %1221 = vmatpush1.msra.mxu0 0.0
    %1222 = vmatprep.subr.mxu0 0.0
    %1223 = vmatpush1.msra.mxu0 0.0
    %1224 = vmatprep.subr.mxu0 0.0
    %1225 = vmatpush1.msra.mxu0 0.0
    %1226 = vmatprep.subr.mxu0 0.0
    %1227 = vmatpush1.msra.mxu0 0.0
    %1228 = vmatprep.subr.mxu0 0.0
    %1229 = vmatpush1.msra.mxu0 0.0
    %1230 = vmatprep.subr.mxu0 0.0
    %1231 = vmatpush1.msra.mxu0 0.0
    %1232 = vmatprep.subr.mxu0 0.0
    %1233 = vmatpush1.msra.mxu0 0.0
    %1234 = vmatprep.subr.mxu0 0.0
    %1235 = vmatpush1.msra.mxu0 0.0
    %1236 = vmatprep.subr.mxu0 0.0
    %1237 = vmatpush1.msra.mxu0 0.0
    %1238 = vmatprep.subr.mxu0 0.0
    %1239 = vmatpush1.msra.mxu0 0.0
    %1240 = vmatprep.subr.mxu0 0.0
    %1241 = vmatpush1.msra.mxu0 %v64
    %1242 = vmatprep.subr.mxu0 0.0
    %1243 = vmatpush2.msra.mxu0 0.0
    %1244 = vmatprep.subr.mxu0 0.0
    %1245 = vmatpush2.msra.mxu0 0.0
    %1246 = vmatprep.subr.mxu0 0.0
    %1247 = vmatpush2.msra.mxu0 0.0
    %1248 = vmatprep.subr.mxu0 0.0
    %1249 = vmatpush2.msra.mxu0 0.0
    %1250 = vmatprep.subr.mxu0 0.0
    %1251 = vmatpush2.msra.mxu0 0.0
    %1252 = vmatprep.subr.mxu0 0.0
    %1253 = vmatpush2.msra.mxu0 0.0
    %1254 = vmatprep.subr.mxu0 0.0
    %1255 = vmatpush2.msra.mxu0 0.0
    %1256 = vmatprep.subr.mxu0 0.0
    %1257 = vmatpush2.msra.mxu0 0.0
    %1258 = vmatprep.subr.mxu0 0.0
    %1259 = vmatpush2.msra.mxu0 0.0
    %1260 = vmatprep.subr.mxu0 0.0
    %1261 = vmatpush2.msra.mxu0 0.0
    %1262 = vmatprep.subr.mxu0 0.0
    %1263 = vmatpush2.msra.mxu0 0.0
    %1264 = vmatprep.subr.mxu0 0.0
    %1265 = vmatpush2.msra.mxu0 0.0
    %1266 = vmatprep.subr.mxu0 0.0
    %1267 = vmatpush2.msra.mxu0 0.0
    %1268 = vmatprep.subr.mxu0 0.0
    %1269 = vmatpush2.msra.mxu0 0.0
    %1270 = vmatprep.subr.mxu0 0.0
    %1271 = vmatpush2.msra.mxu0 0.0
    %1272 = vmatprep.subr.mxu0 0.0
    %1273 = vmatpush2.msra.mxu0 0.0
    %1274 = vmatprep.mubr.f32.mxu0 0.0
    %1275 = vmatmul.mubr.f32.gmra.mxu0 %v1205
    %v1276 = vpop.f32.mrf.mxu0
    %v1277 = vadd.f32 0.0, %v1276
    %v1278 = vpop.f32.mrf.mxu0
    %1279 = vmatprep.mubr.f32.mxu0 0.0
    %1280 = vmatmul.mubr.f32.gmra.mxu0 %v1208
    %v1281 = vpop.f32.mrf.mxu0
    %v1282 = vadd.f32 0.0, %v1281
    %v1283 = vpop.f32.mrf.mxu0
    %1284 = vdwg.mxu0
    %v1286 = vsel %vm190, %v973, 0
    %v1289 = vsel %vm190, %v1049, 0
    %1291 = vmatprep.subr.mxu0 0.0
    %1292 = vmatpush1.msra.mxu0 0.0
    %1293 = vmatprep.subr.mxu0 0.0
    %1294 = vmatpush1.msra.mxu0 0.0
    %1295 = vmatprep.subr.mxu0 0.0
    %1296 = vmatpush1.msra.mxu0 0.0
    %1297 = vmatprep.subr.mxu0 0.0
    %1298 = vmatpush1.msra.mxu0 0.0
    %1299 = vmatprep.subr.mxu0 0.0
    %1300 = vmatpush1.msra.mxu0 0.0
    %1301 = vmatprep.subr.mxu0 0.0
    %1302 = vmatpush1.msra.mxu0 0.0
    %1303 = vmatprep.subr.mxu0 0.0
    %1304 = vmatpush1.msra.mxu0 0.0
    %1305 = vmatprep.subr.mxu0 0.0
    %1306 = vmatpush1.msra.mxu0 0.0
    %1307 = vmatprep.subr.mxu0 0.0
    %1308 = vmatpush1.msra.mxu0 0.0
    %1309 = vmatprep.subr.mxu0 0.0
    %1310 = vmatpush1.msra.mxu0 0.0
    %1311 = vmatprep.subr.mxu0 0.0
    %1312 = vmatpush1.msra.mxu0 0.0
    %1313 = vmatprep.subr.mxu0 0.0
    %1314 = vmatpush1.msra.mxu0 0.0
    %1315 = vmatprep.subr.mxu0 0.0
    %1316 = vmatpush1.msra.mxu0 0.0
    %1317 = vmatprep.subr.mxu0 0.0
    %1318 = vmatpush1.msra.mxu0 0.0
    %1319 = vmatprep.subr.mxu0 0.0
    %1320 = vmatpush1.msra.mxu0 0.0
    %1321 = vmatprep.subr.mxu0 0.0
    %1322 = vmatpush1.msra.mxu0 %v61
    %1323 = vmatprep.subr.mxu0 0.0
    %1324 = vmatpush2.msra.mxu0 0.0
    %1325 = vmatprep.subr.mxu0 0.0
    %1326 = vmatpush2.msra.mxu0 0.0
    %1327 = vmatprep.subr.mxu0 0.0
    %1328 = vmatpush2.msra.mxu0 0.0
    %1329 = vmatprep.subr.mxu0 0.0
    %1330 = vmatpush2.msra.mxu0 0.0
    %1331 = vmatprep.subr.mxu0 0.0
    %1332 = vmatpush2.msra.mxu0 0.0
    %1333 = vmatprep.subr.mxu0 0.0
    %1334 = vmatpush2.msra.mxu0 0.0
    %1335 = vmatprep.subr.mxu0 0.0
    %1336 = vmatpush2.msra.mxu0 0.0
    %1337 = vmatprep.subr.mxu0 0.0
    %1338 = vmatpush2.msra.mxu0 0.0
    %1339 = vmatprep.subr.mxu0 0.0
    %1340 = vmatpush2.msra.mxu0 0.0
    %1341 = vmatprep.subr.mxu0 0.0
    %1342 = vmatpush2.msra.mxu0 0.0
    %1343 = vmatprep.subr.mxu0 0.0
    %1344 = vmatpush2.msra.mxu0 0.0
    %1345 = vmatprep.subr.mxu0 0.0
    %1346 = vmatpush2.msra.mxu0 0.0
    %1347 = vmatprep.subr.mxu0 0.0
    %1348 = vmatpush2.msra.mxu0 0.0
    %1349 = vmatprep.subr.mxu0 0.0
    %1350 = vmatpush2.msra.mxu0 0.0
    %1351 = vmatprep.subr.mxu0 0.0
    %1352 = vmatpush2.msra.mxu0 0.0
    %1353 = vmatprep.subr.mxu0 0.0
    %1354 = vmatpush2.msra.mxu0 0.0
    %1355 = vmatprep.mubr.f32.mxu0 0.0
    %1356 = vmatmul.mubr.f32.gmra.mxu0 %v1286
    %v1357 = vpop.f32.mrf.mxu0
    %v1358 = vadd.f32 %v1277, %v1357
    %v1359 = vpop.f32.mrf.mxu0
    %1360 = vmatprep.mubr.f32.mxu0 0.0
    %1361 = vmatmul.mubr.f32.gmra.mxu0 %v1289
    %v1362 = vpop.f32.mrf.mxu0
    %v1363 = vadd.f32 %v1282, %v1362
    %v1364 = vpop.f32.mrf.mxu0
    %1365 = vdwg.mxu0
    %1366 = vrot.lane.b32.xlu0 %v179, 48
    %v1367 = vpop.permute.xlu0 %1366
    %v1370 = vsel %vm190, %v893, 0
    %1372 = vmatprep.subr.mxu0 0.0
    %1373 = vmatpush1.msra.mxu0 0.0
    %1374 = vmatprep.subr.mxu0 0.0
    %1375 = vmatpush1.msra.mxu0 0.0
    %1376 = vmatprep.subr.mxu0 0.0
    %1377 = vmatpush1.msra.mxu0 0.0
    %1378 = vmatprep.subr.mxu0 0.0
    %1379 = vmatpush1.msra.mxu0 0.0
    %1380 = vmatprep.subr.mxu0 0.0
    %1381 = vmatpush1.msra.mxu0 0.0
    %1382 = vmatprep.subr.mxu0 0.0
    %1383 = vmatpush1.msra.mxu0 0.0
    %1384 = vmatprep.subr.mxu0 0.0
    %1385 = vmatpush1.msra.mxu0 0.0
    %1386 = vmatprep.subr.mxu0 0.0
    %1387 = vmatpush1.msra.mxu0 0.0
    %1388 = vmatprep.subr.mxu0 0.0
    %1389 = vmatpush1.msra.mxu0 0.0
    %1390 = vmatprep.subr.mxu0 0.0
    %1391 = vmatpush1.msra.mxu0 0.0
    %1392 = vmatprep.subr.mxu0 0.0
    %1393 = vmatpush1.msra.mxu0 0.0
    %1394 = vmatprep.subr.mxu0 0.0
    %1395 = vmatpush1.msra.mxu0 0.0
    %1396 = vmatprep.subr.mxu0 0.0
    %1397 = vmatpush1.msra.mxu0 0.0
    %1398 = vmatprep.subr.mxu0 0.0
    %1399 = vmatpush1.msra.mxu0 0.0
    %1400 = vmatprep.subr.mxu0 0.0
    %1401 = vmatpush1.msra.mxu0 0.0
    %1402 = vmatprep.subr.mxu0 0.0
    %1403 = vmatpush1.msra.mxu0 %v1367
    %1404 = vmatprep.subr.mxu0 0.0
    %1405 = vmatpush2.msra.mxu0 0.0
    %1406 = vmatprep.subr.mxu0 0.0
    %1407 = vmatpush2.msra.mxu0 0.0
    %1408 = vmatprep.subr.mxu0 0.0
    %1409 = vmatpush2.msra.mxu0 0.0
    %1410 = vmatprep.subr.mxu0 0.0
    %1411 = vmatpush2.msra.mxu0 0.0
    %1412 = vmatprep.subr.mxu0 0.0
    %1413 = vmatpush2.msra.mxu0 0.0
    %1414 = vmatprep.subr.mxu0 0.0
    %1415 = vmatpush2.msra.mxu0 0.0
    %1416 = vmatprep.subr.mxu0 0.0
    %1417 = vmatpush2.msra.mxu0 0.0
    %1418 = vmatprep.subr.mxu0 0.0
    %1419 = vmatpush2.msra.mxu0 0.0
    %1420 = vmatprep.subr.mxu0 0.0
    %1421 = vmatpush2.msra.mxu0 0.0
    %1422 = vmatprep.subr.mxu0 0.0
    %1423 = vmatpush2.msra.mxu0 0.0
    %1424 = vmatprep.subr.mxu0 0.0
    %1425 = vmatpush2.msra.mxu0 0.0
    %1426 = vmatprep.subr.mxu0 0.0
    %1427 = vmatpush2.msra.mxu0 0.0
    %1428 = vmatprep.subr.mxu0 0.0
    %1429 = vmatpush2.msra.mxu0 0.0
    %1430 = vmatprep.subr.mxu0 0.0
    %1431 = vmatpush2.msra.mxu0 0.0
    %1432 = vmatprep.subr.mxu0 0.0
    %1433 = vmatpush2.msra.mxu0 0.0
    %1434 = vmatprep.subr.mxu0 0.0
    %1435 = vmatpush2.msra.mxu0 0.0
    %1436 = vmatprep.mubr.f32.mxu0 0.0
    %1437 = vmatmul.mubr.f32.gmra.mxu0 %v1370
    %v1438 = vpop.f32.mrf.mxu0
    %v1439 = vadd.f32 0.0, %v1438
    %v1440 = vpop.f32.mrf.mxu0
    %1441 = vdwg.mxu0
    %1442 = vrot.lane.b32.xlu0 %v184, 48
    %v1443 = vpop.permute.xlu0 %1442
    %v1446 = vsel %vm190, %v895, 0
    %1448 = vmatprep.subr.mxu0 0.0
    %1449 = vmatpush1.msra.mxu0 0.0
    %1450 = vmatprep.subr.mxu0 0.0
    %1451 = vmatpush1.msra.mxu0 0.0
    %1452 = vmatprep.subr.mxu0 0.0
    %1453 = vmatpush1.msra.mxu0 0.0
    %1454 = vmatprep.subr.mxu0 0.0
    %1455 = vmatpush1.msra.mxu0 0.0
    %1456 = vmatprep.subr.mxu0 0.0
    %1457 = vmatpush1.msra.mxu0 0.0
    %1458 = vmatprep.subr.mxu0 0.0
    %1459 = vmatpush1.msra.mxu0 0.0
    %1460 = vmatprep.subr.mxu0 0.0
    %1461 = vmatpush1.msra.mxu0 0.0
    %1462 = vmatprep.subr.mxu0 0.0
    %1463 = vmatpush1.msra.mxu0 0.0
    %1464 = vmatprep.subr.mxu0 0.0
    %1465 = vmatpush1.msra.mxu0 0.0
    %1466 = vmatprep.subr.mxu0 0.0
    %1467 = vmatpush1.msra.mxu0 0.0
    %1468 = vmatprep.subr.mxu0 0.0
    %1469 = vmatpush1.msra.mxu0 0.0
    %1470 = vmatprep.subr.mxu0 0.0
    %1471 = vmatpush1.msra.mxu0 0.0
    %1472 = vmatprep.subr.mxu0 0.0
    %1473 = vmatpush1.msra.mxu0 0.0
    %1474 = vmatprep.subr.mxu0 0.0
    %1475 = vmatpush1.msra.mxu0 0.0
    %1476 = vmatprep.subr.mxu0 0.0
    %1477 = vmatpush1.msra.mxu0 0.0
    %1478 = vmatprep.subr.mxu0 0.0
    %1479 = vmatpush1.msra.mxu0 %v1443
    %1480 = vmatprep.subr.mxu0 0.0
    %1481 = vmatpush2.msra.mxu0 0.0
    %1482 = vmatprep.subr.mxu0 0.0
    %1483 = vmatpush2.msra.mxu0 0.0
    %1484 = vmatprep.subr.mxu0 0.0
    %1485 = vmatpush2.msra.mxu0 0.0
    %1486 = vmatprep.subr.mxu0 0.0
    %1487 = vmatpush2.msra.mxu0 0.0
    %1488 = vmatprep.subr.mxu0 0.0
    %1489 = vmatpush2.msra.mxu0 0.0
    %1490 = vmatprep.subr.mxu0 0.0
    %1491 = vmatpush2.msra.mxu0 0.0
    %1492 = vmatprep.subr.mxu0 0.0
    %1493 = vmatpush2.msra.mxu0 0.0
    %1494 = vmatprep.subr.mxu0 0.0
    %1495 = vmatpush2.msra.mxu0 0.0
    %1496 = vmatprep.subr.mxu0 0.0
    %1497 = vmatpush2.msra.mxu0 0.0
    %1498 = vmatprep.subr.mxu0 0.0
    %1499 = vmatpush2.msra.mxu0 0.0
    %1500 = vmatprep.subr.mxu0 0.0
    %1501 = vmatpush2.msra.mxu0 0.0
    %1502 = vmatprep.subr.mxu0 0.0
    %1503 = vmatpush2.msra.mxu0 0.0
    %1504 = vmatprep.subr.mxu0 0.0
    %1505 = vmatpush2.msra.mxu0 0.0
    %1506 = vmatprep.subr.mxu0 0.0
    %1507 = vmatpush2.msra.mxu0 0.0
    %1508 = vmatprep.subr.mxu0 0.0
    %1509 = vmatpush2.msra.mxu0 0.0
    %1510 = vmatprep.subr.mxu0 0.0
    %1511 = vmatpush2.msra.mxu0 0.0
    %1512 = vmatprep.mubr.f32.mxu0 0.0
    %1513 = vmatmul.mubr.f32.gmra.mxu0 %v1446
    %v1514 = vpop.f32.mrf.mxu0
    %v1515 = vadd.f32 0.0, %v1514
    %v1516 = vpop.f32.mrf.mxu0
    %1517 = vdwg.mxu0
    %v1519 = vsel %vm190, %v1439, 0
    %v1522 = vsel %vm190, %v1515, 0
    %1524 = vmatprep.subr.mxu0 0.0
    %1525 = vmatpush1.msra.mxu0 0.0
    %1526 = vmatprep.subr.mxu0 0.0
    %1527 = vmatpush1.msra.mxu0 0.0
    %1528 = vmatprep.subr.mxu0 0.0
    %1529 = vmatpush1.msra.mxu0 0.0
    %1530 = vmatprep.subr.mxu0 0.0
    %1531 = vmatpush1.msra.mxu0 0.0
    %1532 = vmatprep.subr.mxu0 0.0
    %1533 = vmatpush1.msra.mxu0 0.0
    %1534 = vmatprep.subr.mxu0 0.0
    %1535 = vmatpush1.msra.mxu0 0.0
    %1536 = vmatprep.subr.mxu0 0.0
    %1537 = vmatpush1.msra.mxu0 0.0
    %1538 = vmatprep.subr.mxu0 0.0
    %1539 = vmatpush1.msra.mxu0 0.0
    %1540 = vmatprep.subr.mxu0 0.0
    %1541 = vmatpush1.msra.mxu0 0.0
    %1542 = vmatprep.subr.mxu0 0.0
    %1543 = vmatpush1.msra.mxu0 0.0
    %1544 = vmatprep.subr.mxu0 0.0
    %1545 = vmatpush1.msra.mxu0 0.0
    %1546 = vmatprep.subr.mxu0 0.0
    %1547 = vmatpush1.msra.mxu0 0.0
    %1548 = vmatprep.subr.mxu0 0.0
    %1549 = vmatpush1.msra.mxu0 0.0
    %1550 = vmatprep.subr.mxu0 0.0
    %1551 = vmatpush1.msra.mxu0 0.0
    %1552 = vmatprep.subr.mxu0 0.0
    %1553 = vmatpush1.msra.mxu0 0.0
    %1554 = vmatprep.subr.mxu0 0.0
    %1555 = vmatpush1.msra.mxu0 %v67
    %1556 = vmatprep.subr.mxu0 0.0
    %1557 = vmatpush2.msra.mxu0 0.0
    %1558 = vmatprep.subr.mxu0 0.0
    %1559 = vmatpush2.msra.mxu0 0.0
    %1560 = vmatprep.subr.mxu0 0.0
    %1561 = vmatpush2.msra.mxu0 0.0
    %1562 = vmatprep.subr.mxu0 0.0
    %1563 = vmatpush2.msra.mxu0 0.0
    %1564 = vmatprep.subr.mxu0 0.0
    %1565 = vmatpush2.msra.mxu0 0.0
    %1566 = vmatprep.subr.mxu0 0.0
    %1567 = vmatpush2.msra.mxu0 0.0
    %1568 = vmatprep.subr.mxu0 0.0
    %1569 = vmatpush2.msra.mxu0 0.0
    %1570 = vmatprep.subr.mxu0 0.0
    %1571 = vmatpush2.msra.mxu0 0.0
    %1572 = vmatprep.subr.mxu0 0.0
    %1573 = vmatpush2.msra.mxu0 0.0
    %1574 = vmatprep.subr.mxu0 0.0
    %1575 = vmatpush2.msra.mxu0 0.0
    %1576 = vmatprep.subr.mxu0 0.0
    %1577 = vmatpush2.msra.mxu0 0.0
    %1578 = vmatprep.subr.mxu0 0.0
    %1579 = vmatpush2.msra.mxu0 0.0
    %1580 = vmatprep.subr.mxu0 0.0
    %1581 = vmatpush2.msra.mxu0 0.0
    %1582 = vmatprep.subr.mxu0 0.0
    %1583 = vmatpush2.msra.mxu0 0.0
    %1584 = vmatprep.subr.mxu0 0.0
    %1585 = vmatpush2.msra.mxu0 0.0
    %1586 = vmatprep.subr.mxu0 0.0
    %1587 = vmatpush2.msra.mxu0 0.0
    %1588 = vmatprep.mubr.f32.mxu0 0.0
    %1589 = vmatmul.mubr.f32.gmra.mxu0 %v1519
    %v1590 = vpop.f32.mrf.mxu0
    %v1591 = vadd.f32 0.0, %v1590
    %v1592 = vpop.f32.mrf.mxu0
    %1593 = vmatprep.mubr.f32.mxu0 0.0
    %1594 = vmatmul.mubr.f32.gmra.mxu0 %v1522
    %v1595 = vpop.f32.mrf.mxu0
    %v1596 = vadd.f32 0.0, %v1595
    %v1597 = vpop.f32.mrf.mxu0
    %1598 = vdwg.mxu0
    %v1599 = vadd.f32 %v1358, %v1591
    %v1600 = vadd.f32 %v1363, %v1596
    %1601 = vrot.lane.b32.xlu0 %v179, 40
    %v1602 = vpop.permute.xlu0 %1601
    %v1605 = vsel %vm190, %v897, 0
    %1607 = vmatprep.subr.mxu0 0.0
    %1608 = vmatpush1.msra.mxu0 0.0
    %1609 = vmatprep.subr.mxu0 0.0
    %1610 = vmatpush1.msra.mxu0 0.0
    %1611 = vmatprep.subr.mxu0 0.0
    %1612 = vmatpush1.msra.mxu0 0.0
    %1613 = vmatprep.subr.mxu0 0.0
    %1614 = vmatpush1.msra.mxu0 0.0
    %1615 = vmatprep.subr.mxu0 0.0
    %1616 = vmatpush1.msra.mxu0 0.0
    %1617 = vmatprep.subr.mxu0 0.0
    %1618 = vmatpush1.msra.mxu0 0.0
    %1619 = vmatprep.subr.mxu0 0.0
    %1620 = vmatpush1.msra.mxu0 0.0
    %1621 = vmatprep.subr.mxu0 0.0
    %1622 = vmatpush1.msra.mxu0 0.0
    %1623 = vmatprep.subr.mxu0 0.0
    %1624 = vmatpush1.msra.mxu0 0.0
    %1625 = vmatprep.subr.mxu0 0.0
    %1626 = vmatpush1.msra.mxu0 0.0
    %1627 = vmatprep.subr.mxu0 0.0
    %1628 = vmatpush1.msra.mxu0 0.0
    %1629 = vmatprep.subr.mxu0 0.0
    %1630 = vmatpush1.msra.mxu0 0.0
    %1631 = vmatprep.subr.mxu0 0.0
    %1632 = vmatpush1.msra.mxu0 0.0
    %1633 = vmatprep.subr.mxu0 0.0
    %1634 = vmatpush1.msra.mxu0 0.0
    %1635 = vmatprep.subr.mxu0 0.0
    %1636 = vmatpush1.msra.mxu0 0.0
    %1637 = vmatprep.subr.mxu0 0.0
    %1638 = vmatpush1.msra.mxu0 %v1602
    %1639 = vmatprep.subr.mxu0 0.0
    %1640 = vmatpush2.msra.mxu0 0.0
    %1641 = vmatprep.subr.mxu0 0.0
    %1642 = vmatpush2.msra.mxu0 0.0
    %1643 = vmatprep.subr.mxu0 0.0
    %1644 = vmatpush2.msra.mxu0 0.0
    %1645 = vmatprep.subr.mxu0 0.0
    %1646 = vmatpush2.msra.mxu0 0.0
    %1647 = vmatprep.subr.mxu0 0.0
    %1648 = vmatpush2.msra.mxu0 0.0
    %1649 = vmatprep.subr.mxu0 0.0
    %1650 = vmatpush2.msra.mxu0 0.0
    %1651 = vmatprep.subr.mxu0 0.0
    %1652 = vmatpush2.msra.mxu0 0.0
    %1653 = vmatprep.subr.mxu0 0.0
    %1654 = vmatpush2.msra.mxu0 0.0
    %1655 = vmatprep.subr.mxu0 0.0
    %1656 = vmatpush2.msra.mxu0 0.0
    %1657 = vmatprep.subr.mxu0 0.0
    %1658 = vmatpush2.msra.mxu0 0.0
    %1659 = vmatprep.subr.mxu0 0.0
    %1660 = vmatpush2.msra.mxu0 0.0
    %1661 = vmatprep.subr.mxu0 0.0
    %1662 = vmatpush2.msra.mxu0 0.0
    %1663 = vmatprep.subr.mxu0 0.0
    %1664 = vmatpush2.msra.mxu0 0.0
    %1665 = vmatprep.subr.mxu0 0.0
    %1666 = vmatpush2.msra.mxu0 0.0
    %1667 = vmatprep.subr.mxu0 0.0
    %1668 = vmatpush2.msra.mxu0 0.0
    %1669 = vmatprep.subr.mxu0 0.0
    %1670 = vmatpush2.msra.mxu0 0.0
    %1671 = vmatprep.mubr.f32.mxu0 0.0
    %1672 = vmatmul.mubr.f32.gmra.mxu0 %v1605
    %v1673 = vpop.f32.mrf.mxu0
    %v1674 = vadd.f32 0.0, %v1673
    %v1675 = vpop.f32.mrf.mxu0
    %1676 = vdwg.mxu0
    %1677 = vrot.lane.b32.xlu0 %v184, 40
    %v1678 = vpop.permute.xlu0 %1677
    %v1681 = vsel %vm190, %v899, 0
    %1683 = vmatprep.subr.mxu0 0.0
    %1684 = vmatpush1.msra.mxu0 0.0
    %1685 = vmatprep.subr.mxu0 0.0
    %1686 = vmatpush1.msra.mxu0 0.0
    %1687 = vmatprep.subr.mxu0 0.0
    %1688 = vmatpush1.msra.mxu0 0.0
    %1689 = vmatprep.subr.mxu0 0.0
    %1690 = vmatpush1.msra.mxu0 0.0
    %1691 = vmatprep.subr.mxu0 0.0
    %1692 = vmatpush1.msra.mxu0 0.0
    %1693 = vmatprep.subr.mxu0 0.0
    %1694 = vmatpush1.msra.mxu0 0.0
    %1695 = vmatprep.subr.mxu0 0.0
    %1696 = vmatpush1.msra.mxu0 0.0
    %1697 = vmatprep.subr.mxu0 0.0
    %1698 = vmatpush1.msra.mxu0 0.0
    %1699 = vmatprep.subr.mxu0 0.0
    %1700 = vmatpush1.msra.mxu0 0.0
    %1701 = vmatprep.subr.mxu0 0.0
    %1702 = vmatpush1.msra.mxu0 0.0
    %1703 = vmatprep.subr.mxu0 0.0
    %1704 = vmatpush1.msra.mxu0 0.0
    %1705 = vmatprep.subr.mxu0 0.0
    %1706 = vmatpush1.msra.mxu0 0.0
    %1707 = vmatprep.subr.mxu0 0.0
    %1708 = vmatpush1.msra.mxu0 0.0
    %1709 = vmatprep.subr.mxu0 0.0
    %1710 = vmatpush1.msra.mxu0 0.0
    %1711 = vmatprep.subr.mxu0 0.0
    %1712 = vmatpush1.msra.mxu0 0.0
    %1713 = vmatprep.subr.mxu0 0.0
    %1714 = vmatpush1.msra.mxu0 %v1678
    %1715 = vmatprep.subr.mxu0 0.0
    %1716 = vmatpush2.msra.mxu0 0.0
    %1717 = vmatprep.subr.mxu0 0.0
    %1718 = vmatpush2.msra.mxu0 0.0
    %1719 = vmatprep.subr.mxu0 0.0
    %1720 = vmatpush2.msra.mxu0 0.0
    %1721 = vmatprep.subr.mxu0 0.0
    %1722 = vmatpush2.msra.mxu0 0.0
    %1723 = vmatprep.subr.mxu0 0.0
    %1724 = vmatpush2.msra.mxu0 0.0
    %1725 = vmatprep.subr.mxu0 0.0
    %1726 = vmatpush2.msra.mxu0 0.0
    %1727 = vmatprep.subr.mxu0 0.0
    %1728 = vmatpush2.msra.mxu0 0.0
    %1729 = vmatprep.subr.mxu0 0.0
    %1730 = vmatpush2.msra.mxu0 0.0
    %1731 = vmatprep.subr.mxu0 0.0
    %1732 = vmatpush2.msra.mxu0 0.0
    %1733 = vmatprep.subr.mxu0 0.0
    %1734 = vmatpush2.msra.mxu0 0.0
    %1735 = vmatprep.subr.mxu0 0.0
    %1736 = vmatpush2.msra.mxu0 0.0
    %1737 = vmatprep.subr.mxu0 0.0
    %1738 = vmatpush2.msra.mxu0 0.0
    %1739 = vmatprep.subr.mxu0 0.0
    %1740 = vmatpush2.msra.mxu0 0.0
    %1741 = vmatprep.subr.mxu0 0.0
    %1742 = vmatpush2.msra.mxu0 0.0
    %1743 = vmatprep.subr.mxu0 0.0
    %1744 = vmatpush2.msra.mxu0 0.0
    %1745 = vmatprep.subr.mxu0 0.0
    %1746 = vmatpush2.msra.mxu0 0.0
    %1747 = vmatprep.mubr.f32.mxu0 0.0
    %1748 = vmatmul.mubr.f32.gmra.mxu0 %v1681
    %v1749 = vpop.f32.mrf.mxu0
    %v1750 = vadd.f32 0.0, %v1749
    %v1751 = vpop.f32.mrf.mxu0
    %1752 = vdwg.mxu0
    %v1754 = vsel %vm190, %v1674, 0
    %v1757 = vsel %vm190, %v1750, 0
    %1759 = vmatprep.subr.mxu0 0.0
    %1760 = vmatpush1.msra.mxu0 0.0
    %1761 = vmatprep.subr.mxu0 0.0
    %1762 = vmatpush1.msra.mxu0 0.0
    %1763 = vmatprep.subr.mxu0 0.0
    %1764 = vmatpush1.msra.mxu0 0.0
    %1765 = vmatprep.subr.mxu0 0.0
    %1766 = vmatpush1.msra.mxu0 0.0
    %1767 = vmatprep.subr.mxu0 0.0
    %1768 = vmatpush1.msra.mxu0 0.0
    %1769 = vmatprep.subr.mxu0 0.0
    %1770 = vmatpush1.msra.mxu0 0.0
    %1771 = vmatprep.subr.mxu0 0.0
    %1772 = vmatpush1.msra.mxu0 0.0
    %1773 = vmatprep.subr.mxu0 0.0
    %1774 = vmatpush1.msra.mxu0 0.0
    %1775 = vmatprep.subr.mxu0 0.0
    %1776 = vmatpush1.msra.mxu0 0.0
    %1777 = vmatprep.subr.mxu0 0.0
    %1778 = vmatpush1.msra.mxu0 0.0
    %1779 = vmatprep.subr.mxu0 0.0
    %1780 = vmatpush1.msra.mxu0 0.0
    %1781 = vmatprep.subr.mxu0 0.0
    %1782 = vmatpush1.msra.mxu0 0.0
    %1783 = vmatprep.subr.mxu0 0.0
    %1784 = vmatpush1.msra.mxu0 0.0
    %1785 = vmatprep.subr.mxu0 0.0
    %1786 = vmatpush1.msra.mxu0 0.0
    %1787 = vmatprep.subr.mxu0 0.0
    %1788 = vmatpush1.msra.mxu0 0.0
    %1789 = vmatprep.subr.mxu0 0.0
    %1790 = vmatpush1.msra.mxu0 %v70
    %1791 = vmatprep.subr.mxu0 0.0
    %1792 = vmatpush2.msra.mxu0 0.0
    %1793 = vmatprep.subr.mxu0 0.0
    %1794 = vmatpush2.msra.mxu0 0.0
    %1795 = vmatprep.subr.mxu0 0.0
    %1796 = vmatpush2.msra.mxu0 0.0
    %1797 = vmatprep.subr.mxu0 0.0
    %1798 = vmatpush2.msra.mxu0 0.0
    %1799 = vmatprep.subr.mxu0 0.0
    %1800 = vmatpush2.msra.mxu0 0.0
    %1801 = vmatprep.subr.mxu0 0.0
    %1802 = vmatpush2.msra.mxu0 0.0
    %1803 = vmatprep.subr.mxu0 0.0
    %1804 = vmatpush2.msra.mxu0 0.0
    %1805 = vmatprep.subr.mxu0 0.0
    %1806 = vmatpush2.msra.mxu0 0.0
    %1807 = vmatprep.subr.mxu0 0.0
    %1808 = vmatpush2.msra.mxu0 0.0
    %1809 = vmatprep.subr.mxu0 0.0
    %1810 = vmatpush2.msra.mxu0 0.0
    %1811 = vmatprep.subr.mxu0 0.0
    %1812 = vmatpush2.msra.mxu0 0.0
    %1813 = vmatprep.subr.mxu0 0.0
    %1814 = vmatpush2.msra.mxu0 0.0
    %1815 = vmatprep.subr.mxu0 0.0
    %1816 = vmatpush2.msra.mxu0 0.0
    %1817 = vmatprep.subr.mxu0 0.0
    %1818 = vmatpush2.msra.mxu0 0.0
    %1819 = vmatprep.subr.mxu0 0.0
    %1820 = vmatpush2.msra.mxu0 0.0
    %1821 = vmatprep.subr.mxu0 0.0
    %1822 = vmatpush2.msra.mxu0 0.0
    %1823 = vmatprep.mubr.f32.mxu0 0.0
    %1824 = vmatmul.mubr.f32.gmra.mxu0 %v1754
    %v1825 = vpop.f32.mrf.mxu0
    %v1826 = vadd.f32 0.0, %v1825
    %v1827 = vpop.f32.mrf.mxu0
    %1828 = vmatprep.mubr.f32.mxu0 0.0
    %1829 = vmatmul.mubr.f32.gmra.mxu0 %v1757
    %v1830 = vpop.f32.mrf.mxu0
    %v1831 = vadd.f32 0.0, %v1830
    %v1832 = vpop.f32.mrf.mxu0
    %1833 = vdwg.mxu0
    %v1834 = vadd.f32 %v1599, %v1826
    %v1835 = vadd.f32 %v1600, %v1831
    %v1836 = vlaneseq
    %v1837 = vshrl.u32 %v1836, 7
    %v1838 = vsub.s32 1, %v1837
    %v1839 = vrot.slane %v80, %v1838
    %v1840 = vadd.f32 %v1834, %v1839
    %v1841 = vadd.f32 %v1835, %v1839
    %v1842 = vsel %vm89, %v1840, 0.0
    %1843 = vadd.xlane.f32.xlu0 %v1842
    %v1844 = vpop.xlane.xlu0 %1843
    %v1845 = vsel %vm89, %v1841, 0.0
    %1846 = vadd.xlane.f32.xlu0 %v1845
    %v1847 = vpop.xlane.xlu0 %1846
    %v1848 = vrcp.pop 32.0
    %v1849 = vmul.f32 %v1844, %v1848
    %v1850 = vmul.f32 %v1847, %v1848
    %v1851 = vsub.f32 %v1840, %v1849
    %v1852 = vsub.f32 %v1841, %v1850
    %v1853 = vmul.f32 %v1851, %v1851
    %v1854 = vmul.f32 %v1852, %v1852
    %v1855 = vsel %vm89, %v1853, 0.0
    %1856 = vadd.xlane.f32.xlu0 %v1855
    %v1857 = vpop.xlane.xlu0 %1856
    %v1858 = vsel %vm89, %v1854, 0.0
    %1859 = vadd.xlane.f32.xlu0 %v1858
    %v1860 = vpop.xlane.xlu0 %1859
    %v1861 = vmul.f32 %v1857, %v1848
    %v1862 = vmul.f32 %v1860, %v1848
    %v1863 = vadd.f32 %v1861, 1e-05
    %v1864 = vadd.f32 %v1862, 1e-05
    %v1865 = vrsqrt.pop %v1863
    %v1866 = vrsqrt.pop %v1864
    %v1867 = vmul.f32 %v1851, %v1865
    %v1868 = vmul.f32 %v1852, %v1866
    %v1869 = vlaneseq
    %v1870 = vshrl.u32 %v1869, 7
    %v1871 = vsub.s32 4, %v1870
    %v1872 = vrot.slane %v80, %v1871
    %v1873 = vmul.f32 %v1867, %v1872
    %v1874 = vmul.f32 %v1868, %v1872
    %v1875 = vlaneseq
    %v1876 = vshrl.u32 %v1875, 7
    %v1877 = vsub.s32 5, %v1876
    %v1878 = vrot.slane %v80, %v1877
    %v1879 = vadd.f32 %v1873, %v1878
    %v1880 = vadd.f32 %v1874, %v1878
    %v1881 = vlaneseq
    %v1882 = vshrl.u32 %v1881, 7
    %v1883 = vsub.s32 2, %v1882
    %v1884 = vrot.slane %v80, %v1883
    %v1886 = vsel %vm89, %v1879, 0
    %v1889 = vsel %vm89, %v1880, 0
    %1891 = vmatprep.subr.mxu0 0.0
    %1892 = vmatpush1.msra.mxu0 0.0
    %1893 = vmatprep.subr.mxu0 0.0
    %1894 = vmatpush1.msra.mxu0 0.0
    %1895 = vmatprep.subr.mxu0 0.0
    %1896 = vmatpush1.msra.mxu0 0.0
    %1897 = vmatprep.subr.mxu0 0.0
    %1898 = vmatpush1.msra.mxu0 0.0
    %1899 = vmatprep.subr.mxu0 0.0
    %1900 = vmatpush1.msra.mxu0 0.0
    %1901 = vmatprep.subr.mxu0 0.0
    %1902 = vmatpush1.msra.mxu0 0.0
    %1903 = vmatprep.subr.mxu0 0.0
    %1904 = vmatpush1.msra.mxu0 0.0
    %1905 = vmatprep.subr.mxu0 0.0
    %1906 = vmatpush1.msra.mxu0 0.0
    %1907 = vmatprep.subr.mxu0 0.0
    %1908 = vmatpush1.msra.mxu0 0.0
    %1909 = vmatprep.subr.mxu0 0.0
    %1910 = vmatpush1.msra.mxu0 0.0
    %1911 = vmatprep.subr.mxu0 0.0
    %1912 = vmatpush1.msra.mxu0 0.0
    %1913 = vmatprep.subr.mxu0 0.0
    %1914 = vmatpush1.msra.mxu0 0.0
    %1915 = vmatprep.subr.mxu0 0.0
    %1916 = vmatpush1.msra.mxu0 %v71
    %1917 = vmatprep.subr.mxu0 0.0
    %1918 = vmatpush1.msra.mxu0 %v68
    %1919 = vmatprep.subr.mxu0 0.0
    %1920 = vmatpush1.msra.mxu0 %v65
    %1921 = vmatprep.subr.mxu0 0.0
    %1922 = vmatpush1.msra.mxu0 %v62
    %1923 = vmatprep.subr.mxu0 0.0
    %1924 = vmatpush2.msra.mxu0 0.0
    %1925 = vmatprep.subr.mxu0 0.0
    %1926 = vmatpush2.msra.mxu0 0.0
    %1927 = vmatprep.subr.mxu0 0.0
    %1928 = vmatpush2.msra.mxu0 0.0
    %1929 = vmatprep.subr.mxu0 0.0
    %1930 = vmatpush2.msra.mxu0 0.0
    %1931 = vmatprep.subr.mxu0 0.0
    %1932 = vmatpush2.msra.mxu0 0.0
    %1933 = vmatprep.subr.mxu0 0.0
    %1934 = vmatpush2.msra.mxu0 0.0
    %1935 = vmatprep.subr.mxu0 0.0
    %1936 = vmatpush2.msra.mxu0 0.0
    %1937 = vmatprep.subr.mxu0 0.0
    %1938 = vmatpush2.msra.mxu0 0.0
    %1939 = vmatprep.subr.mxu0 0.0
    %1940 = vmatpush2.msra.mxu0 0.0
    %1941 = vmatprep.subr.mxu0 0.0
    %1942 = vmatpush2.msra.mxu0 0.0
    %1943 = vmatprep.subr.mxu0 0.0
    %1944 = vmatpush2.msra.mxu0 0.0
    %1945 = vmatprep.subr.mxu0 0.0
    %1946 = vmatpush2.msra.mxu0 0.0
    %1947 = vmatprep.subr.mxu0 0.0
    %1948 = vmatpush2.msra.mxu0 0.0
    %1949 = vmatprep.subr.mxu0 0.0
    %1950 = vmatpush2.msra.mxu0 0.0
    %1951 = vmatprep.subr.mxu0 0.0
    %1952 = vmatpush2.msra.mxu0 0.0
    %1953 = vmatprep.subr.mxu0 0.0
    %1954 = vmatpush2.msra.mxu0 0.0
    %1955 = vmatprep.mubr.f32.mxu0 0.0
    %1956 = vmatmul.mubr.f32.gmra.mxu0 %v1886
    %v1957 = vpop.f32.mrf.mxu0
    %v1958 = vadd.f32 %v1884, %v1957
    %v1959 = vpop.f32.mrf.mxu0
    %1960 = vmatprep.mubr.f32.mxu0 0.0
    %1961 = vmatmul.mubr.f32.gmra.mxu0 %v1889
    %v1962 = vpop.f32.mrf.mxu0
    %v1963 = vadd.f32 %v1884, %v1962
    %v1964 = vpop.f32.mrf.mxu0
    %1965 = vdwg.mxu0
    %v1966 = vmax.f32 %v1958, 0.0
    %v1967 = vmax.f32 %v1963, 0.0
    %v1968 = vlaneseq
    %v1969 = vshrl.u32 %v1968, 7
    %v1970 = vsub.s32 3, %v1969
    %v1971 = vrot.slane %v80, %v1970
    %vm1972 = vcmask 523264
    %v1974 = vsel %vm1972, %v1966, 0
    %v1977 = vsel %vm1972, %v1967, 0
    %1979 = vmatprep.subr.mxu0 0.0
    %1980 = vmatpush1.msra.mxu0 0.0
    %1981 = vmatprep.subr.mxu0 0.0
    %1982 = vmatpush1.msra.mxu0 0.0
    %1983 = vmatprep.subr.mxu0 0.0
    %1984 = vmatpush1.msra.mxu0 0.0
    %1985 = vmatprep.subr.mxu0 0.0
    %1986 = vmatpush1.msra.mxu0 0.0
    %1987 = vmatprep.subr.mxu0 0.0
    %1988 = vmatpush1.msra.mxu0 0.0
    %1989 = vmatprep.subr.mxu0 0.0
    %1990 = vmatpush1.msra.mxu0 0.0
    %1991 = vmatprep.subr.mxu0 0.0
    %1992 = vmatpush1.msra.mxu0 0.0
    %1993 = vmatprep.subr.mxu0 0.0
    %1994 = vmatpush1.msra.mxu0 0.0
    %1995 = vmatprep.subr.mxu0 0.0
    %1996 = vmatpush1.msra.mxu0 %v79
    %1997 = vmatprep.subr.mxu0 0.0
    %1998 = vmatpush1.msra.mxu0 %v78
    %1999 = vmatprep.subr.mxu0 0.0
    %2000 = vmatpush1.msra.mxu0 %v77
    %2001 = vmatprep.subr.mxu0 0.0
    %2002 = vmatpush1.msra.mxu0 %v76
    %2003 = vmatprep.subr.mxu0 0.0
    %2004 = vmatpush1.msra.mxu0 %v75
    %2005 = vmatprep.subr.mxu0 0.0
    %2006 = vmatpush1.msra.mxu0 %v74
    %2007 = vmatprep.subr.mxu0 0.0
    %2008 = vmatpush1.msra.mxu0 %v73
    %2009 = vmatprep.subr.mxu0 0.0
    %2010 = vmatpush1.msra.mxu0 %v72
    %2011 = vmatprep.subr.mxu0 0.0
    %2012 = vmatpush2.msra.mxu0 0.0
    %2013 = vmatprep.subr.mxu0 0.0
    %2014 = vmatpush2.msra.mxu0 0.0
    %2015 = vmatprep.subr.mxu0 0.0
    %2016 = vmatpush2.msra.mxu0 0.0
    %2017 = vmatprep.subr.mxu0 0.0
    %2018 = vmatpush2.msra.mxu0 0.0
    %2019 = vmatprep.subr.mxu0 0.0
    %2020 = vmatpush2.msra.mxu0 0.0
    %2021 = vmatprep.subr.mxu0 0.0
    %2022 = vmatpush2.msra.mxu0 0.0
    %2023 = vmatprep.subr.mxu0 0.0
    %2024 = vmatpush2.msra.mxu0 0.0
    %2025 = vmatprep.subr.mxu0 0.0
    %2026 = vmatpush2.msra.mxu0 0.0
    %2027 = vmatprep.subr.mxu0 0.0
    %2028 = vmatpush2.msra.mxu0 0.0
    %2029 = vmatprep.subr.mxu0 0.0
    %2030 = vmatpush2.msra.mxu0 0.0
    %2031 = vmatprep.subr.mxu0 0.0
    %2032 = vmatpush2.msra.mxu0 0.0
    %2033 = vmatprep.subr.mxu0 0.0
    %2034 = vmatpush2.msra.mxu0 0.0
    %2035 = vmatprep.subr.mxu0 0.0
    %2036 = vmatpush2.msra.mxu0 0.0
    %2037 = vmatprep.subr.mxu0 0.0
    %2038 = vmatpush2.msra.mxu0 0.0
    %2039 = vmatprep.subr.mxu0 0.0
    %2040 = vmatpush2.msra.mxu0 0.0
    %2041 = vmatprep.subr.mxu0 0.0
    %2042 = vmatpush2.msra.mxu0 0.0
    %2043 = vmatprep.mubr.f32.mxu0 0.0
    %2044 = vmatmul.mubr.f32.gmra.mxu0 %v1974
    %v2045 = vpop.f32.mrf.mxu0
    %v2046 = vadd.f32 %v1971, %v2045
    %v2047 = vpop.f32.mrf.mxu0
    %2048 = vmatprep.mubr.f32.mxu0 0.0
    %2049 = vmatmul.mubr.f32.gmra.mxu0 %v1977
    %v2050 = vpop.f32.mrf.mxu0
    %v2051 = vadd.f32 %v1971, %v2050
    %v2052 = vpop.f32.mrf.mxu0
    %2053 = vdwg.mxu0
    %v2054 = vadd.f32 %v1879, %v2046
    %v2055 = vadd.f32 %v1880, %v2051
    %v2056 = vsel %vm89, %v2054, 0.0
    %2057 = vadd.xlane.f32.xlu0 %v2056
    %v2058 = vpop.xlane.xlu0 %2057
    %v2059 = vsel %vm89, %v2055, 0.0
    %2060 = vadd.xlane.f32.xlu0 %v2059
    %v2061 = vpop.xlane.xlu0 %2060
    %v2062 = vmul.f32 %v2058, %v1848
    %v2063 = vmul.f32 %v2061, %v1848
    %v2064 = vsub.f32 %v2054, %v2062
    %v2065 = vsub.f32 %v2055, %v2063
    %v2066 = vmul.f32 %v2064, %v2064
    %v2067 = vmul.f32 %v2065, %v2065
    %v2068 = vsel %vm89, %v2066, 0.0
    %2069 = vadd.xlane.f32.xlu0 %v2068
    %v2070 = vpop.xlane.xlu0 %2069
    %v2071 = vsel %vm89, %v2067, 0.0
    %2072 = vadd.xlane.f32.xlu0 %v2071
    %v2073 = vpop.xlane.xlu0 %2072
    %v2074 = vmul.f32 %v2070, %v1848
    %v2075 = vmul.f32 %v2073, %v1848
    %v2076 = vadd.f32 %v2074, 1e-05
    %v2077 = vadd.f32 %v2075, 1e-05
    %v2078 = vrsqrt.pop %v2076
    %v2079 = vrsqrt.pop %v2077
    %v2080 = vmul.f32 %v2064, %v2078
    %v2081 = vmul.f32 %v2065, %v2079
    %v2082 = vlaneseq
    %v2083 = vshrl.u32 %v2082, 7
    %v2084 = vsub.s32 6, %v2083
    %v2085 = vrot.slane %v80, %v2084
    %v2086 = vmul.f32 %v2080, %v2085
    %v2087 = vmul.f32 %v2081, %v2085
    %v2088 = vlaneseq
    %v2089 = vshrl.u32 %v2088, 7
    %v2090 = vsub.s32 7, %v2089
    %v2091 = vrot.slane %v80, %v2090
    %v2092 = vadd.f32 %v2086, %v2091
    %v2093 = vadd.f32 %v2087, %v2091
    %2094 = vst.msk [vmem:[#allocation8] sm:$0xff] %vm89, %v2092
    %2095 = vst.msk [vmem:[#allocation8 + $0x8] sm:$0xff] %vm89, %v2093
    // Predicated region
    $region34: #{tpu_custom_call.1} parent=1 // pred_check
      _
    $region35: #{tpu_custom_call.1} parent=1 // pred_check_branch
      %2097 = sbr.rel (0) target = $region37
    $region36: #{tpu_custom_call.1} parent=1 // pred_region
      %s2099 = ssub.s32 256, 256
      %2100 = vsyncadd [#allocation4], %s2099
      %s2101 = sshll.u32 [#allocation8], 4
      %s2102 = int_to_ptr.vmem [resolvable:$true] %s2101
      %2107 = dma.vmem_to_hbm [thread:$0]  %s2102, 256, %s5, [#allocation4], 128, 128, 8
    $region37: #{tpu_custom_call.1} parent=1 // pred_fallthru
      _
    // Predicated region
    $region38: #{tpu_custom_call.1} parent=1 // pred_check
      _
    $region39: #{tpu_custom_call.1} parent=1 // pred_check_branch
      %2109 = sbr.rel (0) target = $region41
    $region40: #{tpu_custom_call.1} parent=1 // pred_region
      %2110 = dma.done [#allocation4], 256
    $region41: #{tpu_custom_call.1} parent=1 // pred_fallthru
      _
    %2111 = vsyncpa [#allocation3], 1
    %2112 = vsyncpa [#allocation6], 1
    %2113 = vsyncpa [#allocation4], 1

</llo_original>
